<compile_context>
chip_gen: v6e
topology: v6e:2x2x1
jax: 0.10.0
libtpu: 0.0.40
codegen_flags: <defaults>
</compile_context>

<pallas_src>
import functools

import jax
import jax.numpy as jnp
from jax import lax
from jax.experimental import pallas as pl
from jax.experimental.pallas import tpu as pltpu

_BN_EPS = 1e-5


def _vmem_limit_bytes():
    """Generation-aware scoped-VMEM limit (~75% of capacity, safe fallback)."""
    cap = None
    try:
        cap = getattr(pltpu.get_tpu_info(), "vmem_capacity_bytes", None)
    except Exception:
        cap = None
    if not cap:
        cap = 64 * 1024 * 1024          # conservative: v7x per-TensorCore VMEM
    return (3 * int(cap)) // 4          # 96 MiB on v5e/v6e, 48 MiB on v7x


# ----------------------------------------------------------------------------
# Fused kernel: pool(+idx) + conv1+BN+ReLU + conv2+BN+ReLU + conv3+BN+ReLU
#               + zero-padded residual + final ReLU          (grid = (B,))
# ----------------------------------------------------------------------------
def _bottleneck_kernel(x_ref, base_ref, cmask_ref,
                       w1_ref, s1_ref, b1_ref,
                       w2_ref, s2_ref, b2_ref,
                       w3_ref, s3_ref, b3_ref,
                       o_ref, idx_ref, e1pad_ref,
                       *, half_w, full_w):
    cin = idx_ref.shape[1]
    cout = o_ref.shape[1]
    m = x_ref.shape[2]
    cint = w1_ref.shape[0]
    pad = half_w + 1

    xg = x_ref[0]                                    # (4*Cin, M) f32
    base = base_ref[...]                             # (1, M) int32

    # ---- 2x2/s2 max pool with PyTorch-style flat indices -------------------
    best_v = xg[0:cin, :]
    best_i = jnp.broadcast_to(base, (cin, m))
    for g, off in ((1, 1), (2, full_w), (3, full_w + 1)):
        cand = xg[g * cin:(g + 1) * cin, :]
        take = cand > best_v                         # strict '>' keeps first max
        best_i = jnp.where(take, base + off, best_i)
        best_v = jnp.where(take, cand, best_v)
    idx_ref[0] = best_i                              # lane-dense int32 store

    # ---- conv1 (2x2, s2) + BN1 + ReLU:  (Cint, 4Cin) @ (4Cin, M) -----------
    y1 = jnp.dot(w1_ref[...], xg.astype(jnp.bfloat16),
                 preferred_element_type=jnp.float32)
    e1 = jnp.maximum(y1 * s1_ref[...] + b1_ref[...], 0.0)       # (Cint, M) f32

    # ---- conv2 (3x3, p1) + BN2 + ReLU as ONE (Cint, 9Cint) @ (9Cint, M) ----
    # Flat e1 line with (W2+1) zero columns on each side: tap (dh, dw) is the
    # contiguous window at offset dh*W2+dw.  Only the two tiny pad strips are
    # zeroed per step; out-of-range columns are killed by the lane masks.
    e1pad_ref[:, 0:pad] = jnp.zeros((cint, pad), jnp.float32)
    e1pad_ref[:, pad + m:pad + m + pad] = jnp.zeros((cint, pad), jnp.float32)
    e1pad_ref[:, pad:pad + m] = e1

    mask_l = cmask_ref[0:1, :]                       # zero where j == 0     (dw=-1)
    mask_r = cmask_ref[1:2, :]                       # zero where j == W2-1  (dw=+1)
    taps = []
    for dh in (-1, 0, 1):
        for dw in (-1, 0, 1):
            start = pad + dh * half_w + dw
            win = e1pad_ref[:, start:start + m]      # (Cint, M) f32
            if dw == -1:
                win = win * mask_l
            elif dw == 1:
                win = win * mask_r
            taps.append(win)
    slab = jnp.concatenate(taps, axis=0).astype(jnp.bfloat16)   # (9*Cint, M)
    y2 = jnp.dot(w2_ref[...], slab, preferred_element_type=jnp.float32)
    e2 = jnp.maximum(y2 * s2_ref[...] + b2_ref[...], 0.0)       # (Cint, M)

    # ---- conv3 (1x1) + BN3 + ReLU:  (Cout, Cint) @ (Cint, M) ---------------
    y3 = jnp.dot(w3_ref[...], e2.astype(jnp.bfloat16),
                 preferred_element_type=jnp.float32)
    ext = jnp.maximum(y3 * s3_ref[...] + b3_ref[...], 0.0)      # (Cout, M)

    # ---- residual (implicit zero channel padding) + final ReLU -------------
    o_ref[0, 0:cin, :] = jnp.maximum(ext[0:cin, :] + best_v,
                                     0.0).astype(o_ref.dtype)
    if cout > cin:
        o_ref[0, cin:cout, :] = jnp.maximum(ext[cin:cout, :],
                                            0.0).astype(o_ref.dtype)


# ----------------------------------------------------------------------------
# Wrapper
# ----------------------------------------------------------------------------
def _bn_fold(gamma, beta, mean, var, eps=_BN_EPS):
    scale = gamma / jnp.sqrt(var + eps)
    bias = beta - mean * scale
    return (scale.reshape(-1, 1).astype(jnp.float32),
            bias.reshape(-1, 1).astype(jnp.float32))


def downsampling_bottleneck(x_nchw, params):
    B, Cin, H, W = x_nchw.shape
    assert H % 2 == 0 and W % 2 == 0, "even spatial dims required"
    H2, W2 = H // 2, W // 2
    M = H2 * W2
    Cint = params["w1"].shape[0]
    Cout = params["w3"].shape[0]
    assert Cout >= Cin, "residual channel padding assumes out_chans >= in_chans"

    # Channels-major input: rows ordered (kh, kw, cin), columns = flat (i, j).
    # This single (4*Cin, M) slab is both the conv1 im2col matrix and the four
    # pool taps, so the 2x2/s2 structure never has to be rebuilt in-kernel.
    x = x_nchw.astype(jnp.float32)
    x_taps = (x.reshape(B, Cin, H2, 2, W2, 2)
               .transpose(0, 3, 5, 1, 2, 4)
               .reshape(B, 4 * Cin, M))
    # TODO(synk): a bf16 x_taps would halve the dominant HBM read, but bf16
    # compares can flip the pool argmax for near-tied values.

    # PyTorch-style flat pool-index base: (2i)*W + (2j) per output pixel.
    ii = jnp.arange(H2, dtype=jnp.int32).reshape(H2, 1)
    jj = jnp.arange(W2, dtype=jnp.int32).reshape(1, W2)
    base = (2 * ii * W + 2 * jj).reshape(1, M)

    # conv2 edge-column masks for the dw = -1 / +1 taps.
    j = jnp.arange(W2, dtype=jnp.int32)
    mask_l = jnp.where(j >= 1, 1.0, 0.0).astype(jnp.float32)
    mask_r = jnp.where(j <= W2 - 2, 1.0, 0.0).astype(jnp.float32)
    col_masks = jnp.stack([jnp.tile(mask_l, H2), jnp.tile(mask_r, H2)])  # (2, M)

    # Fold BN (eval mode); lay conv weights out as (C_out, K) bf16 matrices.
    s1, b1 = _bn_fold(*params["bn1"])
    s2, b2 = _bn_fold(*params["bn2"])
    s3, b3 = _bn_fold(*params["bn3"])
    w1m = (jnp.transpose(params["w1"], (0, 2, 3, 1))
           .reshape(Cint, 4 * Cin).astype(jnp.bfloat16))
    w2m = (jnp.transpose(params["w2"], (0, 2, 3, 1))
           .reshape(Cint, 9 * Cint).astype(jnp.bfloat16))
    w3m = params["w3"].reshape(Cout, Cint).astype(jnp.bfloat16)

    kernel = functools.partial(_bottleneck_kernel, half_w=W2, full_w=W)
    const = lambda b: (0, 0)

    out_flat, idx_flat = pl.pallas_call(
        kernel,
        grid=(B,),
        in_specs=[
            pl.BlockSpec((1, 4 * Cin, M), lambda b: (b, 0, 0)),   # x_taps
            pl.BlockSpec((1, M), const),                          # index base
            pl.BlockSpec((2, M), const),                          # column masks
            pl.BlockSpec((Cint, 4 * Cin), const),                 # w1
            pl.BlockSpec((Cint, 1), const),                       # s1
            pl.BlockSpec((Cint, 1), const),                       # b1
            pl.BlockSpec((Cint, 9 * Cint), const),                # w2
            pl.BlockSpec((Cint, 1), const),                       # s2
            pl.BlockSpec((Cint, 1), const),                       # b2
            pl.BlockSpec((Cout, Cint), const),                    # w3
            pl.BlockSpec((Cout, 1), const),                       # s3
            pl.BlockSpec((Cout, 1), const),                       # b3
        ],
        out_specs=(
            pl.BlockSpec((1, Cout, M), lambda b: (b, 0, 0)),
            pl.BlockSpec((1, Cin, M), lambda b: (b, 0, 0)),
        ),
        out_shape=(
            jax.ShapeDtypeStruct((B, Cout, M), jnp.float32),
            jax.ShapeDtypeStruct((B, Cin, M), jnp.int32),
        ),
        scratch_shapes=[pltpu.VMEM((Cint, M + 2 * (W2 + 1)), jnp.float32)],
        compiler_params=pltpu.CompilerParams(
            dimension_semantics=("parallel",),
            vmem_limit_bytes=_vmem_limit_bytes(),
        ),
    )(x_taps, base, col_masks, w1m, s1, b1, w2m, s2, b2, w3m, s3, b3)

    # NCHW outputs directly from the kernel -- free reshapes, no transposes.
    return (out_flat.reshape(B, Cout, H2, W2),
            idx_flat.reshape(B, Cin, H2, W2))


# ----------------------------------------------------------------------------
# Parameter setup (deterministic, synthetic)
# ----------------------------------------------------------------------------
def init_params(key, in_chans, out_chans, internal_ratio=4):
    cint = in_chans // internal_ratio
    ks = jax.random.split(key, 6)

    def bn_params(k, c):
        k1, k2, k3, k4 = jax.random.split(k, 4)
        gamma = 1.0 + 0.1 * jax.random.normal(k1, (c,), jnp.float32)
        beta = 0.1 * jax.random.normal(k2, (c,), jnp.float32)
        mean = 0.1 * jax.random.normal(k3, (c,), jnp.float32)
        var = jnp.abs(jax.random.normal(k4, (c,), jnp.float32)) + 0.5
        return (gamma, beta, mean, var)

    return {
        # PyTorch OIHW conv weights
        "w1": 0.2 * jax.random.normal(ks[0], (cint, in_chans, 2, 2), jnp.float32),
        "w2": 0.2 * jax.random.normal(ks[1], (cint, cint, 3, 3), jnp.float32),
        "w3": 0.2 * jax.random.normal(ks[2], (out_chans, cint, 1, 1), jnp.float32),
        "bn1": bn_params(ks[3], cint),
        "bn2": bn_params(ks[4], cint),
        "bn3": bn_params(ks[5], out_chans),
    }


# ----------------------------------------------------------------------------
# Pure-JAX reference (f32) for the correctness check
# ----------------------------------------------------------------------------
def _reference(x_nchw, params):
    x = jnp.transpose(x_nchw, (0, 2, 3, 1)).astype(jnp.float32)
    B, H, W, Cin = x.shape
    H2, W2 = H // 2, W // 2

    main = lax.reduce_window(x, -jnp.inf, lax.max, (1, 2, 2, 1), (1, 2, 2, 1), "VALID")

    def conv(inp, w_oihw, stride, pad):
        w = jnp.transpose(w_oihw, (2, 3, 1, 0))  # HWIO
        return lax.conv_general_dilated(
            inp, w, (stride, stride), pad, dimension_numbers=("NHWC", "HWIO", "NHWC"))

    def bn_relu(y, bn):
        g, b, m, v = bn
        s = g / jnp.sqrt(v + _BN_EPS)
        return jnp.maximum(y * s + (b - m * s), 0.0)

    e = bn_relu(conv(x, params["w1"], 2, "VALID"), params["bn1"])
    e = bn_relu(conv(e, params["w2"], 1, [(1, 1), (1, 1)]), params["bn2"])
    e = bn_relu(conv(e, params["w3"], 1, "VALID"), params["bn3"])
    Cout = e.shape[-1]
    mp = jnp.pad(main, ((0, 0), (0, 0), (0, 0), (0, Cout - Cin)))
    out = jnp.maximum(mp + e, 0.0)

    # max-pool indices (PyTorch flat-index semantics, first-max tie-break)
    xr = (x_nchw.astype(jnp.float32)
          .reshape(B, Cin, H2, 2, W2, 2)
          .transpose(0, 1, 2, 4, 3, 5)
          .reshape(B, Cin, H2, W2, 4))
    a = jnp.argmax(xr, axis=-1)
    di, dj = a // 2, a % 2
    ii = jnp.arange(H2).reshape(1, 1, H2, 1)
    jj = jnp.arange(W2).reshape(1, 1, 1, W2)
    idx_ref = (2 * ii + di) * W + (2 * jj + dj)
    return jnp.transpose(out, (0, 3, 1, 2)), idx_ref.astype(jnp.int32)


# ----------------------------------------------------------------------------
if __name__ == "__main__":
    # ENet-style first downsampling bottleneck: 16 -> 64 channels.
    B, Cin, H, W = 2, 16, 32, 32
    Cout = 64

    key = jax.random.PRNGKey(0)
    kx, kp = jax.random.split(key)
    x = jax.random.normal(kx, (B, Cin, H, W), jnp.float32)
    params = init_params(kp, Cin, Cout, internal_ratio=4)

    fwd = jax.jit(downsampling_bottleneck)
    out, idx = fwd(x, params)
    out = jax.block_until_ready(out)
    idx = jax.block_until_ready(idx)

    out_ref, idx_ref = _reference(x, params)
    assert out.shape == (B, Cout, H // 2, W // 2)
    assert idx.shape == (B, Cin, H // 2, W // 2)
    # bf16 matmul operands (f32 accumulation) -> compare against the f32
    # reference with a correspondingly relaxed tolerance.
    assert jnp.allclose(out, out_ref, atol=1e-1, rtol=1e-1)
    assert jnp.array_equal(idx, idx_ref)

    print("KERNEL_OK")
</pallas_src>

<mosaic_0001>
module attributes {stable_mosaic.version = 11 : i64} {
  func.func @_bottleneck_kernel(%arg0: i32, %arg1: memref<1x64x256xf32, #tpu.memory_space<vmem>>, %arg2: memref<1x256xi32, #tpu.memory_space<vmem>>, %arg3: memref<2x256xf32, #tpu.memory_space<vmem>>, %arg4: memref<4x64xbf16, #tpu.memory_space<vmem>>, %arg5: memref<4x1xf32, #tpu.memory_space<vmem>>, %arg6: memref<4x1xf32, #tpu.memory_space<vmem>>, %arg7: memref<4x36xbf16, #tpu.memory_space<vmem>>, %arg8: memref<4x1xf32, #tpu.memory_space<vmem>>, %arg9: memref<4x1xf32, #tpu.memory_space<vmem>>, %arg10: memref<64x4xbf16, #tpu.memory_space<vmem>>, %arg11: memref<64x1xf32, #tpu.memory_space<vmem>>, %arg12: memref<64x1xf32, #tpu.memory_space<vmem>>, %arg13: memref<1x64x256xf32, #tpu.memory_space<vmem>>, %arg14: memref<1x16x256xi32, #tpu.memory_space<vmem>>, %arg15: memref<4x290xf32, #tpu.memory_space<vmem>>) attributes {dimension_semantics = [#tpu.dimension_semantics<parallel>], iteration_bounds = array<i64: 2>, scalar_prefetch = 0 : i64, scratch_operands = 1 : i64, tpu.core_type = #tpu.core_type<tc>, window_params = [{transform_indices = @transform_0, window_bounds = array<i64: 1, 64, 256>}, {pipeline_mode = #tpu.pipeline_mode<synchronous>, transform_indices = @transform_1, window_bounds = array<i64: 1, 256>}, {pipeline_mode = #tpu.pipeline_mode<synchronous>, transform_indices = @transform_2, window_bounds = array<i64: 2, 256>}, {pipeline_mode = #tpu.pipeline_mode<synchronous>, transform_indices = @transform_3, window_bounds = array<i64: 4, 64>}, {pipeline_mode = #tpu.pipeline_mode<synchronous>, transform_indices = @transform_4, window_bounds = array<i64: 4, 1>}, {pipeline_mode = #tpu.pipeline_mode<synchronous>, transform_indices = @transform_5, window_bounds = array<i64: 4, 1>}, {pipeline_mode = #tpu.pipeline_mode<synchronous>, transform_indices = @transform_6, window_bounds = array<i64: 4, 36>}, {pipeline_mode = #tpu.pipeline_mode<synchronous>, transform_indices = @transform_7, window_bounds = array<i64: 4, 1>}, {pipeline_mode = #tpu.pipeline_mode<synchronous>, transform_indices = @transform_8, window_bounds = array<i64: 4, 1>}, {pipeline_mode = #tpu.pipeline_mode<synchronous>, transform_indices = @transform_9, window_bounds = array<i64: 64, 4>}, {pipeline_mode = #tpu.pipeline_mode<synchronous>, transform_indices = @transform_10, window_bounds = array<i64: 64, 1>}, {pipeline_mode = #tpu.pipeline_mode<synchronous>, transform_indices = @transform_11, window_bounds = array<i64: 64, 1>}, {transform_indices = @transform_12, window_bounds = array<i64: 1, 64, 256>}, {transform_indices = @transform_13, window_bounds = array<i64: 1, 16, 256>}]} {
    %c0 = arith.constant 0 : index
    %c0_0 = arith.constant 0 : index
    %c0_1 = arith.constant 0 : index
    %0 = vector.load %arg1[%c0, %c0_0, %c0_1] : memref<1x64x256xf32, #tpu.memory_space<vmem>>, vector<1x64x256xf32>
    %1 = vector.shape_cast %0 : vector<1x64x256xf32> to vector<64x256xf32>
    %c0_2 = arith.constant 0 : index
    %c0_3 = arith.constant 0 : index
    %2 = vector.load %arg2[%c0_2, %c0_3] : memref<1x256xi32, #tpu.memory_space<vmem>>, vector<1x256xi32>
    %3 = vector.extract_strided_slice %1 {offsets = [0, 0], sizes = [16, 256], strides = [1, 1]} : vector<64x256xf32> to vector<16x256xf32>
    %4 = vector.shape_cast %2 : vector<1x256xi32> to vector<1x256xi32>
    %5 = vector.broadcast %4 : vector<1x256xi32> to vector<16x256xi32>
    %6 = vector.extract_strided_slice %1 {offsets = [16, 0], sizes = [16, 256], strides = [1, 1]} : vector<64x256xf32> to vector<16x256xf32>
    %7 = arith.cmpf ogt, %6, %3 : vector<16x256xf32>
    %c1_i32 = arith.constant 1 : i32
    %8 = vector.broadcast %c1_i32 : i32 to vector<1x256xi32>
    %9 = arith.addi %2, %8 : vector<1x256xi32>
    %10 = vector.shape_cast %9 : vector<1x256xi32> to vector<1x256xi32>
    %11 = vector.broadcast %10 : vector<1x256xi32> to vector<16x256xi32>
    %12 = arith.select %7, %11, %5 : vector<16x256xi1>, vector<16x256xi32>
    %13 = arith.select %7, %6, %3 : vector<16x256xi1>, vector<16x256xf32>
    %14 = vector.extract_strided_slice %1 {offsets = [32, 0], sizes = [16, 256], strides = [1, 1]} : vector<64x256xf32> to vector<16x256xf32>
    %15 = arith.cmpf ogt, %14, %13 : vector<16x256xf32>
    %c32_i32 = arith.constant 32 : i32
    %16 = vector.broadcast %c32_i32 : i32 to vector<1x256xi32>
    %17 = arith.addi %2, %16 : vector<1x256xi32>
    %18 = vector.shape_cast %17 : vector<1x256xi32> to vector<1x256xi32>
    %19 = vector.broadcast %18 : vector<1x256xi32> to vector<16x256xi32>
    %20 = arith.select %15, %19, %12 : vector<16x256xi1>, vector<16x256xi32>
    %21 = arith.select %15, %14, %13 : vector<16x256xi1>, vector<16x256xf32>
    %22 = vector.extract_strided_slice %1 {offsets = [48, 0], sizes = [16, 256], strides = [1, 1]} : vector<64x256xf32> to vector<16x256xf32>
    %23 = arith.cmpf ogt, %22, %21 : vector<16x256xf32>
    %c33_i32 = arith.constant 33 : i32
    %24 = vector.broadcast %c33_i32 : i32 to vector<1x256xi32>
    %25 = arith.addi %2, %24 : vector<1x256xi32>
    %26 = vector.shape_cast %25 : vector<1x256xi32> to vector<1x256xi32>
    %27 = vector.broadcast %26 : vector<1x256xi32> to vector<16x256xi32>
    %28 = arith.select %23, %27, %20 : vector<16x256xi1>, vector<16x256xi32>
    %29 = arith.select %23, %22, %21 : vector<16x256xi1>, vector<16x256xf32>
    %c0_4 = arith.constant 0 : index
    %c0_5 = arith.constant 0 : index
    %c0_6 = arith.constant 0 : index
    %30 = vector.load %arg14[%c0_4, %c0_5, %c0_6] : memref<1x16x256xi32, #tpu.memory_space<vmem>>, vector<1x16x256xi32>
    %31 = vector.shape_cast %30 : vector<1x16x256xi32> to vector<16x256xi32>
    %32 = vector.shape_cast %28 : vector<16x256xi32> to vector<1x16x256xi32>
    tpu.vector_store %arg14[%c0_4, %c0_5, %c0_6], %32 {strides = array<i32>} : memref<1x16x256xi32, #tpu.memory_space<vmem>>, vector<1x16x256xi32>,
    %c0_7 = arith.constant 0 : index
    %c0_8 = arith.constant 0 : index
    %33 = vector.load %arg4[%c0_7, %c0_8] : memref<4x64xbf16, #tpu.memory_space<vmem>>, vector<4x64xbf16>
    %34 = arith.truncf %1 : vector<64x256xf32> to vector<64x256xbf16>
    %cst = arith.constant dense<0.000000e+00> : vector<4x256xf32>
    %35 = tpu.matmul %33, %34, %cst {dimension_numbers = #tpu.dot_dimension_numbers<[1], [0], [0], [1], [0, 0, 1, 1], [], []>} : vector<4x64xbf16>, vector<64x256xbf16>, vector<4x256xf32> -> vector<4x256xf32>
    %c0_9 = arith.constant 0 : index
    %c0_10 = arith.constant 0 : index
    %36 = vector.load %arg5[%c0_9, %c0_10] : memref<4x1xf32, #tpu.memory_space<vmem>>, vector<4x1xf32>
    %37 = vector.broadcast %36 : vector<4x1xf32> to vector<4x256xf32>
    %38 = arith.mulf %35, %37 : vector<4x256xf32>
    %c0_11 = arith.constant 0 : index
    %c0_12 = arith.constant 0 : index
    %39 = vector.load %arg6[%c0_11, %c0_12] : memref<4x1xf32, #tpu.memory_space<vmem>>, vector<4x1xf32>
    %40 = vector.broadcast %39 : vector<4x1xf32> to vector<4x256xf32>
    %41 = arith.addf %38, %40 : vector<4x256xf32>
    %cst_13 = arith.constant 0.000000e+00 : f32
    %42 = vector.broadcast %cst_13 : f32 to vector<4x256xf32>
    %43 = arith.maximumf %41, %42 : vector<4x256xf32>
    %cst_14 = arith.constant 0.000000e+00 : f32
    %44 = vector.broadcast %cst_14 : f32 to vector<4x17xf32>
    %c0_15 = arith.constant 0 : index
    %c0_16 = arith.constant 0 : index
    %45 = vector.load %arg15[%c0_15, %c0_16] : memref<4x290xf32, #tpu.memory_space<vmem>>, vector<4x17xf32>
    tpu.vector_store %arg15[%c0_15, %c0_16], %44 {strides = array<i32>} : memref<4x290xf32, #tpu.memory_space<vmem>>, vector<4x17xf32>,
    %cst_17 = arith.constant 0.000000e+00 : f32
    %46 = vector.broadcast %cst_17 : f32 to vector<4x17xf32>
    %c0_18 = arith.constant 0 : index
    %c273 = arith.constant 273 : index
    %47 = vector.load %arg15[%c0_18, %c273] : memref<4x290xf32, #tpu.memory_space<vmem>>, vector<4x17xf32>
    tpu.vector_store %arg15[%c0_18, %c273], %46 {strides = array<i32>} : memref<4x290xf32, #tpu.memory_space<vmem>>, vector<4x17xf32>,
    %c0_19 = arith.constant 0 : index
    %c17 = arith.constant 17 : index
    %48 = vector.load %arg15[%c0_19, %c17] : memref<4x290xf32, #tpu.memory_space<vmem>>, vector<4x256xf32>
    tpu.vector_store %arg15[%c0_19, %c17], %43 {strides = array<i32>} : memref<4x290xf32, #tpu.memory_space<vmem>>, vector<4x256xf32>,
    %c0_20 = arith.constant 0 : index
    %c0_21 = arith.constant 0 : index
    %49 = vector.load %arg3[%c0_20, %c0_21] : memref<2x256xf32, #tpu.memory_space<vmem>>, vector<1x256xf32>
    %c1 = arith.constant 1 : index
    %c0_22 = arith.constant 0 : index
    %50 = vector.load %arg3[%c1, %c0_22] : memref<2x256xf32, #tpu.memory_space<vmem>>, vector<1x256xf32>
    %c0_23 = arith.constant 0 : index
    %c0_24 = arith.constant 0 : index
    %51 = vector.load %arg15[%c0_23, %c0_24] : memref<4x290xf32, #tpu.memory_space<vmem>>, vector<4x256xf32>
    %52 = vector.broadcast %49 : vector<1x256xf32> to vector<4x256xf32>
    %53 = arith.mulf %51, %52 : vector<4x256xf32>
    %c0_25 = arith.constant 0 : index
    %c1_26 = arith.constant 1 : index
    %54 = vector.load %arg15[%c0_25, %c1_26] : memref<4x290xf32, #tpu.memory_space<vmem>>, vector<4x256xf32>
    %c0_27 = arith.constant 0 : index
    %c2 = arith.constant 2 : index
    %55 = vector.load %arg15[%c0_27, %c2] : memref<4x290xf32, #tpu.memory_space<vmem>>, vector<4x256xf32>
    %56 = vector.broadcast %50 : vector<1x256xf32> to vector<4x256xf32>
    %57 = arith.mulf %55, %56 : vector<4x256xf32>
    %c0_28 = arith.constant 0 : index
    %c16 = arith.constant 16 : index
    %58 = vector.load %arg15[%c0_28, %c16] : memref<4x290xf32, #tpu.memory_space<vmem>>, vector<4x256xf32>
    %59 = vector.broadcast %49 : vector<1x256xf32> to vector<4x256xf32>
    %60 = arith.mulf %58, %59 : vector<4x256xf32>
    %c0_29 = arith.constant 0 : index
    %c17_30 = arith.constant 17 : index
    %61 = vector.load %arg15[%c0_29, %c17_30] : memref<4x290xf32, #tpu.memory_space<vmem>>, vector<4x256xf32>
    %c0_31 = arith.constant 0 : index
    %c18 = arith.constant 18 : index
    %62 = vector.load %arg15[%c0_31, %c18] : memref<4x290xf32, #tpu.memory_space<vmem>>, vector<4x256xf32>
    %63 = vector.broadcast %50 : vector<1x256xf32> to vector<4x256xf32>
    %64 = arith.mulf %62, %63 : vector<4x256xf32>
    %c0_32 = arith.constant 0 : index
    %c32 = arith.constant 32 : index
    %65 = vector.load %arg15[%c0_32, %c32] : memref<4x290xf32, #tpu.memory_space<vmem>>, vector<4x256xf32>
    %66 = vector.broadcast %49 : vector<1x256xf32> to vector<4x256xf32>
    %67 = arith.mulf %65, %66 : vector<4x256xf32>
    %c0_33 = arith.constant 0 : index
    %c33 = arith.constant 33 : index
    %68 = vector.load %arg15[%c0_33, %c33] : memref<4x290xf32, #tpu.memory_space<vmem>>, vector<4x256xf32>
    %c0_34 = arith.constant 0 : index
    %c34 = arith.constant 34 : index
    %69 = vector.load %arg15[%c0_34, %c34] : memref<4x290xf32, #tpu.memory_space<vmem>>, vector<4x256xf32>
    %70 = vector.broadcast %50 : vector<1x256xf32> to vector<4x256xf32>
    %71 = arith.mulf %69, %70 : vector<4x256xf32>
    %72 = tpu.concatenate %53, %54, %57, %60, %61, %64, %67, %68, %71 in 0 : vector<4x256xf32>, vector<4x256xf32>, vector<4x256xf32>, vector<4x256xf32>, vector<4x256xf32>, vector<4x256xf32>, vector<4x256xf32>, vector<4x256xf32>, vector<4x256xf32> -> vector<36x256xf32>
    %73 = arith.truncf %72 : vector<36x256xf32> to vector<36x256xbf16>
    %c0_35 = arith.constant 0 : index
    %c0_36 = arith.constant 0 : index
    %74 = vector.load %arg7[%c0_35, %c0_36] : memref<4x36xbf16, #tpu.memory_space<vmem>>, vector<4x36xbf16>
    %cst_37 = arith.constant dense<0.000000e+00> : vector<4x256xf32>
    %75 = tpu.matmul %74, %73, %cst_37 {dimension_numbers = #tpu.dot_dimension_numbers<[1], [0], [0], [1], [0, 0, 1, 1], [], []>} : vector<4x36xbf16>, vector<36x256xbf16>, vector<4x256xf32> -> vector<4x256xf32>
    %c0_38 = arith.constant 0 : index
    %c0_39 = arith.constant 0 : index
    %76 = vector.load %arg8[%c0_38, %c0_39] : memref<4x1xf32, #tpu.memory_space<vmem>>, vector<4x1xf32>
    %77 = vector.broadcast %76 : vector<4x1xf32> to vector<4x256xf32>
    %78 = arith.mulf %75, %77 : vector<4x256xf32>
    %c0_40 = arith.constant 0 : index
    %c0_41 = arith.constant 0 : index
    %79 = vector.load %arg9[%c0_40, %c0_41] : memref<4x1xf32, #tpu.memory_space<vmem>>, vector<4x1xf32>
    %80 = vector.broadcast %79 : vector<4x1xf32> to vector<4x256xf32>
    %81 = arith.addf %78, %80 : vector<4x256xf32>
    %cst_42 = arith.constant 0.000000e+00 : f32
    %82 = vector.broadcast %cst_42 : f32 to vector<4x256xf32>
    %83 = arith.maximumf %81, %82 : vector<4x256xf32>
    %c0_43 = arith.constant 0 : index
    %c0_44 = arith.constant 0 : index
    %84 = vector.load %arg10[%c0_43, %c0_44] : memref<64x4xbf16, #tpu.memory_space<vmem>>, vector<64x4xbf16>
    %85 = arith.truncf %83 : vector<4x256xf32> to vector<4x256xbf16>
    %cst_45 = arith.constant dense<0.000000e+00> : vector<64x256xf32>
    %86 = tpu.matmul %84, %85, %cst_45 {dimension_numbers = #tpu.dot_dimension_numbers<[1], [0], [0], [1], [0, 0, 1, 1], [], []>} : vector<64x4xbf16>, vector<4x256xbf16>, vector<64x256xf32> -> vector<64x256xf32>
    %c0_46 = arith.constant 0 : index
    %c0_47 = arith.constant 0 : index
    %87 = vector.load %arg11[%c0_46, %c0_47] : memref<64x1xf32, #tpu.memory_space<vmem>>, vector<64x1xf32>
    %88 = vector.broadcast %87 : vector<64x1xf32> to vector<64x256xf32>
    %89 = arith.mulf %86, %88 : vector<64x256xf32>
    %c0_48 = arith.constant 0 : index
    %c0_49 = arith.constant 0 : index
    %90 = vector.load %arg12[%c0_48, %c0_49] : memref<64x1xf32, #tpu.memory_space<vmem>>, vector<64x1xf32>
    %91 = vector.broadcast %90 : vector<64x1xf32> to vector<64x256xf32>
    %92 = arith.addf %89, %91 : vector<64x256xf32>
    %cst_50 = arith.constant 0.000000e+00 : f32
    %93 = vector.broadcast %cst_50 : f32 to vector<64x256xf32>
    %94 = arith.maximumf %92, %93 : vector<64x256xf32>
    %95 = vector.extract_strided_slice %94 {offsets = [0, 0], sizes = [16, 256], strides = [1, 1]} : vector<64x256xf32> to vector<16x256xf32>
    %96 = arith.addf %95, %29 : vector<16x256xf32>
    %cst_51 = arith.constant 0.000000e+00 : f32
    %97 = vector.broadcast %cst_51 : f32 to vector<16x256xf32>
    %98 = arith.maximumf %96, %97 : vector<16x256xf32>
    %c0_52 = arith.constant 0 : index
    %c0_53 = arith.constant 0 : index
    %c0_54 = arith.constant 0 : index
    %99 = vector.load %arg13[%c0_52, %c0_53, %c0_54] : memref<1x64x256xf32, #tpu.memory_space<vmem>>, vector<1x16x256xf32>
    %100 = vector.shape_cast %99 : vector<1x16x256xf32> to vector<16x256xf32>
    %101 = vector.shape_cast %98 : vector<16x256xf32> to vector<1x16x256xf32>
    tpu.vector_store %arg13[%c0_52, %c0_53, %c0_54], %101 {strides = array<i32>} : memref<1x64x256xf32, #tpu.memory_space<vmem>>, vector<1x16x256xf32>,
    %102 = vector.extract_strided_slice %94 {offsets = [16, 0], sizes = [48, 256], strides = [1, 1]} : vector<64x256xf32> to vector<48x256xf32>
    %cst_55 = arith.constant 0.000000e+00 : f32
    %103 = vector.broadcast %cst_55 : f32 to vector<48x256xf32>
    %104 = arith.maximumf %102, %103 : vector<48x256xf32>
    %c0_56 = arith.constant 0 : index
    %c16_57 = arith.constant 16 : index
    %c0_58 = arith.constant 0 : index
    %105 = vector.load %arg13[%c0_56, %c16_57, %c0_58] : memref<1x64x256xf32, #tpu.memory_space<vmem>>, vector<1x48x256xf32>
    %106 = vector.shape_cast %105 : vector<1x48x256xf32> to vector<48x256xf32>
    %107 = vector.shape_cast %104 : vector<48x256xf32> to vector<1x48x256xf32>
    tpu.vector_store %arg13[%c0_56, %c16_57, %c0_58], %107 {strides = array<i32>} : memref<1x64x256xf32, #tpu.memory_space<vmem>>, vector<1x48x256xf32>,
    return
  }
  func.func @transform_0(%arg0: i32) -> (i32, i32, i32) {
    %c0_i32 = arith.constant 0 : i32
    %c0_i32_0 = arith.constant 0 : i32
    %c0_i32_1 = arith.constant 0 : i32
    return %arg0, %c0_i32, %c0_i32_0 : i32, i32, i32
  }
  func.func @transform_1(%arg0: i32) -> (i32, i32) {
    %c0_i32 = arith.constant 0 : i32
    %c0_i32_0 = arith.constant 0 : i32
    %c0_i32_1 = arith.constant 0 : i32
    return %c0_i32, %c0_i32_0 : i32, i32
  }
  func.func @transform_2(%arg0: i32) -> (i32, i32) {
    %c0_i32 = arith.constant 0 : i32
    %c0_i32_0 = arith.constant 0 : i32
    %c0_i32_1 = arith.constant 0 : i32
    return %c0_i32, %c0_i32_0 : i32, i32
  }
  func.func @transform_3(%arg0: i32) -> (i32, i32) {
    %c0_i32 = arith.constant 0 : i32
    %c0_i32_0 = arith.constant 0 : i32
    %c0_i32_1 = arith.constant 0 : i32
    return %c0_i32, %c0_i32_0 : i32, i32
  }
  func.func @transform_4(%arg0: i32) -> (i32, i32) {
    %c0_i32 = arith.constant 0 : i32
    %c0_i32_0 = arith.constant 0 : i32
    %c0_i32_1 = arith.constant 0 : i32
    return %c0_i32, %c0_i32_0 : i32, i32
  }
  func.func @transform_5(%arg0: i32) -> (i32, i32) {
    %c0_i32 = arith.constant 0 : i32
    %c0_i32_0 = arith.constant 0 : i32
    %c0_i32_1 = arith.constant 0 : i32
    return %c0_i32, %c0_i32_0 : i32, i32
  }
  func.func @transform_6(%arg0: i32) -> (i32, i32) {
    %c0_i32 = arith.constant 0 : i32
    %c0_i32_0 = arith.constant 0 : i32
    %c0_i32_1 = arith.constant 0 : i32
    return %c0_i32, %c0_i32_0 : i32, i32
  }
  func.func @transform_7(%arg0: i32) -> (i32, i32) {
    %c0_i32 = arith.constant 0 : i32
    %c0_i32_0 = arith.constant 0 : i32
    %c0_i32_1 = arith.constant 0 : i32
    return %c0_i32, %c0_i32_0 : i32, i32
  }
  func.func @transform_8(%arg0: i32) -> (i32, i32) {
    %c0_i32 = arith.constant 0 : i32
    %c0_i32_0 = arith.constant 0 : i32
    %c0_i32_1 = arith.constant 0 : i32
    return %c0_i32, %c0_i32_0 : i32, i32
  }
  func.func @transform_9(%arg0: i32) -> (i32, i32) {
    %c0_i32 = arith.constant 0 : i32
    %c0_i32_0 = arith.constant 0 : i32
    %c0_i32_1 = arith.constant 0 : i32
    return %c0_i32, %c0_i32_0 : i32, i32
  }
  func.func @transform_10(%arg0: i32) -> (i32, i32) {
    %c0_i32 = arith.constant 0 : i32
    %c0_i32_0 = arith.constant 0 : i32
    %c0_i32_1 = arith.constant 0 : i32
    return %c0_i32, %c0_i32_0 : i32, i32
  }
  func.func @transform_11(%arg0: i32) -> (i32, i32) {
    %c0_i32 = arith.constant 0 : i32
    %c0_i32_0 = arith.constant 0 : i32
    %c0_i32_1 = arith.constant 0 : i32
    return %c0_i32, %c0_i32_0 : i32, i32
  }
  func.func @transform_12(%arg0: i32) -> (i32, i32, i32) {
    %c0_i32 = arith.constant 0 : i32
    %c0_i32_0 = arith.constant 0 : i32
    %c0_i32_1 = arith.constant 0 : i32
    return %arg0, %c0_i32, %c0_i32_0 : i32, i32, i32
  }
  func.func @transform_13(%arg0: i32) -> (i32, i32, i32) {
    %c0_i32 = arith.constant 0 : i32
    %c0_i32_0 = arith.constant 0 : i32
    %c0_i32_1 = arith.constant 0 : i32
    return %arg0, %c0_i32, %c0_i32_0 : i32, i32, i32
  }
}

</mosaic_0001>

<llo_original>
// kernel: tile.17
$region0: #{tile.17}
  #allocation0 [shape = 's32[1]{0}', space=sflag, size = 0x4, scoped, tag = 'scoped memory for tile.17']
  %s0 = inlined_call_operand.vmem [shape: f32[16], index: 0, kind: input, shape index: {}]
  %s1 = inlined_call_operand.vmem [shape: f32[16,16], index: 1, kind: output, shape index: {}]
  // Predicated region
  $region2: #{tile.17} parent=0 // pred_check
    _
  $region3: #{tile.17} parent=0 // pred_check_branch
    %3 = sbr.rel (0) target = $region5
  $region4: #{tile.17} parent=0 // pred_region
    _
  $region5: #{tile.17} parent=0 // pred_fallthru
    _
  %v4 = vld [vmem:[%s0] ss:$0 sm:$0xff]
  %5 = vst [vmem:[%s1] sm:$0xff] %v4
  %s6 = scalar_lea.vmem %s1, 8
  %7 = vst [vmem:[%s6] sm:$0xff] %v4

// kernel: tile.19
$region0: #{tile.19}
  %s0 = inlined_call_operand.vmem [shape: f32[16,16], index: 0, kind: input, shape index: {}]
  %s1 = inlined_call_operand.vmem [shape: f32[1,256], index: 1, kind: output, shape index: {}]
  $region1: #{tile.19} parent=0
    #allocation0 [shape = 'u8[8192]{0}', space=vmem, size = 0x2000, scoped, tag = 'scoped mem for output reshape']
    %s2 = smov 3
    %v3 = vld [vmem:[%s0] ss:$8 sm:%s2]
    %vm4 = vcmask 130048
    %5 = vst.msk [vmem:[#allocation0] ss:$8 sm:$0x3] %vm4, %v3
    %s6 = scalar_lea.vmem %s0, 7
    %s7 = smov 3
    %v8 = vld [vmem:[%s6] ss:$8 sm:%s7]
    %9 = vrot.lane.b32.xlu0 %v8, 112
    %v10 = vpop.permute.xlu0 %9
    %vm11 = vcmask 1048448
    %12 = vst.msk [vmem:[#allocation0] ss:$8 sm:$0x3] %vm11, %v10
    %s13 = scalar_lea.vmem %s0, 6
    %s14 = smov 3
    %v15 = vld [vmem:[%s13] ss:$8 sm:%s14]
    %16 = vrot.lane.b32.xlu0 %v15, 96
    %v17 = vpop.permute.xlu0 %16
    %vm18 = vcmask 917248
    %19 = vst.msk [vmem:[#allocation0] ss:$8 sm:$0x3] %vm18, %v17
    %s20 = scalar_lea.vmem %s0, 5
    %s21 = smov 3
    %v22 = vld [vmem:[%s20] ss:$8 sm:%s21]
    %23 = vrot.lane.b32.xlu0 %v22, 80
    %v24 = vpop.permute.xlu0 %23
    %vm25 = vcmask 786048
    %26 = vst.msk [vmem:[#allocation0] ss:$8 sm:$0x3] %vm25, %v24
    %s27 = scalar_lea.vmem %s0, 4
    %s28 = smov 3
    %v29 = vld [vmem:[%s27] ss:$8 sm:%s28]
    %30 = vrot.lane.b32.xlu0 %v29, 64
    %v31 = vpop.permute.xlu0 %30
    %vm32 = vcmask 654848
    %33 = vst.msk [vmem:[#allocation0] ss:$8 sm:$0x3] %vm32, %v31
    %s34 = scalar_lea.vmem %s0, 3
    %s35 = smov 3
    %v36 = vld [vmem:[%s34] ss:$8 sm:%s35]
    %37 = vrot.lane.b32.xlu0 %v36, 48
    %v38 = vpop.permute.xlu0 %37
    %vm39 = vcmask 523648
    %40 = vst.msk [vmem:[#allocation0] ss:$8 sm:$0x3] %vm39, %v38
    %s41 = scalar_lea.vmem %s0, 2
    %s42 = smov 3
    %v43 = vld [vmem:[%s41] ss:$8 sm:%s42]
    %44 = vrot.lane.b32.xlu0 %v43, 32
    %v45 = vpop.permute.xlu0 %44
    %vm46 = vcmask 392448
    %47 = vst.msk [vmem:[#allocation0] ss:$8 sm:$0x3] %vm46, %v45
    %s48 = scalar_lea.vmem %s0, 1
    %s49 = smov 3
    %v50 = vld [vmem:[%s48] ss:$8 sm:%s49]
    %51 = vrot.lane.b32.xlu0 %v50, 16
    %v52 = vpop.permute.xlu0 %51
    %vm53 = vcmask 261248
    %54 = vst.msk [vmem:[#allocation0] ss:$8 sm:$0x3] %vm53, %v52
    %s56 = sshll.u32 1, 1
    %s57 = ssub.s32 %s56, 1
    %v59 = vld [vmem:[#allocation0] sm:%s57]
    %s60 = sshll.u32 1, 1
    %s61 = ssub.s32 %s60, 1
    %62 = vst [vmem:[%s1] sm:%s61] %v59
    %s63 = scalar_lea.vmem [#allocation0], 8
    %v64 = vld [vmem:[%s63] sm:%s57]
    %s65 = sshll.u32 1, 1
    %s66 = ssub.s32 %s65, 1
    %s67 = scalar_lea.vmem %s1, 1
    %68 = vst [vmem:[%s67] sm:%s66] %v64

// kernel: downsampling_bottleneck.1
$region0: #{downsampling_bottleneck.1}
  #allocation0 [shape = 'u32[]', space=smem, size = 0x4, offset = 0x4, fixed_abs, tag = 'smem constant byte address 0x4 - core index']
  #allocation1 [shape = 'u32[144,128]{1,0:T(1,128)}', space=vmem, size = 0x12000, scoped, tag = 'internal scratch']
  #allocation2 [shape = 'f32[4,290]{1,0:T(4,128)}', space=vmem, size = 0x1800, scoped, tag = 'scratch operand']
  %s0 = inlined_call_operand.vmem [shape: f32[2,64,256], index: 0, kind: input, shape index: {}]
  %s1 = inlined_call_operand.vmem [shape: s32[1,256], index: 1, kind: input, shape index: {}]
  %s2 = inlined_call_operand.vmem [shape: f32[2,256], index: 2, kind: input, shape index: {}]
  %s3 = inlined_call_operand.vmem [shape: bf16[4,64], index: 3, kind: input, shape index: {}]
  %s4 = inlined_call_operand.vmem [shape: f32[4,1], index: 4, kind: input, shape index: {}]
  %s5 = inlined_call_operand.vmem [shape: f32[4,1], index: 5, kind: input, shape index: {}]
  %s6 = inlined_call_operand.vmem [shape: bf16[4,36], index: 6, kind: input, shape index: {}]
  %s7 = inlined_call_operand.vmem [shape: f32[4,1], index: 7, kind: input, shape index: {}]
  %s8 = inlined_call_operand.vmem [shape: f32[4,1], index: 8, kind: input, shape index: {}]
  %s9 = inlined_call_operand.vmem [shape: bf16[64,4], index: 9, kind: input, shape index: {}]
  %s10 = inlined_call_operand.vmem [shape: f32[64,1], index: 10, kind: input, shape index: {}]
  %s11 = inlined_call_operand.vmem [shape: f32[64,1], index: 11, kind: input, shape index: {}]
  %s12 = inlined_call_operand.vmem [shape: f32[2,64,256], index: 12, kind: output, shape index: {0}]
  %s13 = inlined_call_operand.vmem [shape: s32[2,16,256], index: 13, kind: output, shape index: {1}]
  %14 = xla_tuple %s12, %s13
  %s15 = sld [smem:[#allocation0]]
  $region89: #{downsampling_bottleneck.1} parent=0
    _
  %s17 = ssub.s32 1, %s15
  %s18 = scalar_select 0, %s17, %s15
  loop: start=0, step=1, limit=4
  $region2: #{downsampling_bottleneck.1} parent=0 // loop_pre_header
    _
  $region3: #{downsampling_bottleneck.1} parent=0 // loop_header
    %s20 = sphi 0, %s24
    %p21 = scmp.ge.s32.totalorder %s20, 4
    %s30 = sphi 0, %s32
    %s33 = sphi 0, %s30
    %s34 = sphi 0, %s33
    %s50 = sphi 0, %s34
    %s54 = sphi 0, %s54
    %s56 = sphi 0, %s54
    %s57 = sphi 0, %s56
    %s71 = sphi 0, %s57
    %s75 = sphi 0, %s75
    %s77 = sphi 0, %s75
    %s78 = sphi 0, %s77
    %s92 = sphi 0, %s78
    %s96 = sphi 0, %s96
    %s98 = sphi 0, %s96
    %s99 = sphi 0, %s98
    %s113 = sphi 0, %s99
    %s117 = sphi 0, %s117
    %s119 = sphi 0, %s117
    %s120 = sphi 0, %s119
    %s134 = sphi 0, %s120
    %s138 = sphi 0, %s138
    %s140 = sphi 0, %s138
    %s141 = sphi 0, %s140
    %s155 = sphi 0, %s141
    %s159 = sphi 0, %s159
    %s161 = sphi 0, %s159
    %s162 = sphi 0, %s161
    %s176 = sphi 0, %s162
    %s180 = sphi 0, %s180
    %s182 = sphi 0, %s180
    %s183 = sphi 0, %s182
    %s197 = sphi 0, %s183
    %s201 = sphi 0, %s201
    %s203 = sphi 0, %s201
    %s204 = sphi 0, %s203
    %s218 = sphi 0, %s204
    %s222 = sphi 0, %s222
    %s224 = sphi 0, %s222
    %s225 = sphi 0, %s224
    %s239 = sphi 0, %s225
    %s243 = sphi 0, %s243
    %s245 = sphi 0, %s243
    %s246 = sphi 0, %s245
    %s260 = sphi 0, %s246
    %s264 = sphi 0, %s264
    %s266 = sphi 0, %s264
    %s267 = sphi 0, %s266
    %s281 = sphi 0, %s267
    %s287 = sphi 0, %s289
    %s290 = sphi 0, %s287
    %s291 = sphi 0, %s290
    %s307 = sphi 0, %s291
    %s313 = sphi 0, %s315
    %s316 = sphi 0, %s313
    %s317 = sphi 0, %s316
    %s333 = sphi 0, %s317
  $region4: #{downsampling_bottleneck.1} parent=0 // loop_header_branch
    %23 = sbr.rel (%p21) target = $region8
  $region5: #{downsampling_bottleneck.1} parent=0 // loop_body
    %s25 = ssub.s32 %s20, 1
    %s26 = ssub.s32 %s20, 2
    %s27 = sadd.s32 %s20, 1
    %s28 = ssub.s32 %s20, %s27
    %p29 = scmp.eq.s32.totalorder %s28, 0
    %s31 = sadd.s32 %s30, 1
    %s32 = scalar_select %p29, %s30, %s31
    %p35 = pneg %p29
    %p36 = scmp.eq.s32.totalorder %s20, 1
    %p37 = por %p35, %p36
    %p38 = scmp.ne.s32.totalorder %s30, %s33
    %p39 = scmp.eq.s32.totalorder %s20, 0
    %p40 = por %p38, %p39
    %p41 = scmp.ne.s32.totalorder %s30, %s33
    %p42 = scmp.eq.s32.totalorder %s25, 1
    %p43 = por %p41, %p42
    %p44 = scmp.ne.s32.totalorder %s33, %s34
    %p45 = scmp.eq.s32.totalorder %s25, 0
    %p46 = por %p44, %p45
    %p47 = scmp.ne.s32.totalorder %s33, %s34
    %p48 = scmp.eq.s32.totalorder %s26, 1
    %p49 = por %p47, %p48
    %p51 = scmp.ne.s32.totalorder %s34, %s50
    %p52 = scmp.eq.s32.totalorder %s26, 0
    %p53 = por %p51, %p52
    %s55 = sadd.s32 %s54, 1
    %p58 = scmp.eq.s32.totalorder %s20, 1
    %p59 = scmp.ne.s32.totalorder %s54, %s56
    %p60 = scmp.eq.s32.totalorder %s20, 0
    %p61 = por %p59, %p60
    %p62 = scmp.ne.s32.totalorder %s54, %s56
    %p63 = scmp.eq.s32.totalorder %s25, 1
    %p64 = por %p62, %p63
    %p65 = scmp.ne.s32.totalorder %s56, %s57
    %p66 = scmp.eq.s32.totalorder %s25, 0
    %p67 = por %p65, %p66
    %p68 = scmp.ne.s32.totalorder %s56, %s57
    %p69 = scmp.eq.s32.totalorder %s26, 1
    %p70 = por %p68, %p69
    %p72 = scmp.ne.s32.totalorder %s57, %s71
    %p73 = scmp.eq.s32.totalorder %s26, 0
    %p74 = por %p72, %p73
    %s76 = sadd.s32 %s75, 1
    %p79 = scmp.eq.s32.totalorder %s20, 1
    %p80 = scmp.ne.s32.totalorder %s75, %s77
    %p81 = scmp.eq.s32.totalorder %s20, 0
    %p82 = por %p80, %p81
    %p83 = scmp.ne.s32.totalorder %s75, %s77
    %p84 = scmp.eq.s32.totalorder %s25, 1
    %p85 = por %p83, %p84
    %p86 = scmp.ne.s32.totalorder %s77, %s78
    %p87 = scmp.eq.s32.totalorder %s25, 0
    %p88 = por %p86, %p87
    %p89 = scmp.ne.s32.totalorder %s77, %s78
    %p90 = scmp.eq.s32.totalorder %s26, 1
    %p91 = por %p89, %p90
    %p93 = scmp.ne.s32.totalorder %s78, %s92
    %p94 = scmp.eq.s32.totalorder %s26, 0
    %p95 = por %p93, %p94
    %s97 = sadd.s32 %s96, 1
    %p100 = scmp.eq.s32.totalorder %s20, 1
    %p101 = scmp.ne.s32.totalorder %s96, %s98
    %p102 = scmp.eq.s32.totalorder %s20, 0
    %p103 = por %p101, %p102
    %p104 = scmp.ne.s32.totalorder %s96, %s98
    %p105 = scmp.eq.s32.totalorder %s25, 1
    %p106 = por %p104, %p105
    %p107 = scmp.ne.s32.totalorder %s98, %s99
    %p108 = scmp.eq.s32.totalorder %s25, 0
    %p109 = por %p107, %p108
    %p110 = scmp.ne.s32.totalorder %s98, %s99
    %p111 = scmp.eq.s32.totalorder %s26, 1
    %p112 = por %p110, %p111
    %p114 = scmp.ne.s32.totalorder %s99, %s113
    %p115 = scmp.eq.s32.totalorder %s26, 0
    %p116 = por %p114, %p115
    %s118 = sadd.s32 %s117, 1
    %p121 = scmp.eq.s32.totalorder %s20, 1
    %p122 = scmp.ne.s32.totalorder %s117, %s119
    %p123 = scmp.eq.s32.totalorder %s20, 0
    %p124 = por %p122, %p123
    %p125 = scmp.ne.s32.totalorder %s117, %s119
    %p126 = scmp.eq.s32.totalorder %s25, 1
    %p127 = por %p125, %p126
    %p128 = scmp.ne.s32.totalorder %s119, %s120
    %p129 = scmp.eq.s32.totalorder %s25, 0
    %p130 = por %p128, %p129
    %p131 = scmp.ne.s32.totalorder %s119, %s120
    %p132 = scmp.eq.s32.totalorder %s26, 1
    %p133 = por %p131, %p132
    %p135 = scmp.ne.s32.totalorder %s120, %s134
    %p136 = scmp.eq.s32.totalorder %s26, 0
    %p137 = por %p135, %p136
    %s139 = sadd.s32 %s138, 1
    %p142 = scmp.eq.s32.totalorder %s20, 1
    %p143 = scmp.ne.s32.totalorder %s138, %s140
    %p144 = scmp.eq.s32.totalorder %s20, 0
    %p145 = por %p143, %p144
    %p146 = scmp.ne.s32.totalorder %s138, %s140
    %p147 = scmp.eq.s32.totalorder %s25, 1
    %p148 = por %p146, %p147
    %p149 = scmp.ne.s32.totalorder %s140, %s141
    %p150 = scmp.eq.s32.totalorder %s25, 0
    %p151 = por %p149, %p150
    %p152 = scmp.ne.s32.totalorder %s140, %s141
    %p153 = scmp.eq.s32.totalorder %s26, 1
    %p154 = por %p152, %p153
    %p156 = scmp.ne.s32.totalorder %s141, %s155
    %p157 = scmp.eq.s32.totalorder %s26, 0
    %p158 = por %p156, %p157
    %s160 = sadd.s32 %s159, 1
    %p163 = scmp.eq.s32.totalorder %s20, 1
    %p164 = scmp.ne.s32.totalorder %s159, %s161
    %p165 = scmp.eq.s32.totalorder %s20, 0
    %p166 = por %p164, %p165
    %p167 = scmp.ne.s32.totalorder %s159, %s161
    %p168 = scmp.eq.s32.totalorder %s25, 1
    %p169 = por %p167, %p168
    %p170 = scmp.ne.s32.totalorder %s161, %s162
    %p171 = scmp.eq.s32.totalorder %s25, 0
    %p172 = por %p170, %p171
    %p173 = scmp.ne.s32.totalorder %s161, %s162
    %p174 = scmp.eq.s32.totalorder %s26, 1
    %p175 = por %p173, %p174
    %p177 = scmp.ne.s32.totalorder %s162, %s176
    %p178 = scmp.eq.s32.totalorder %s26, 0
    %p179 = por %p177, %p178
    %s181 = sadd.s32 %s180, 1
    %p184 = scmp.eq.s32.totalorder %s20, 1
    %p185 = scmp.ne.s32.totalorder %s180, %s182
    %p186 = scmp.eq.s32.totalorder %s20, 0
    %p187 = por %p185, %p186
    %p188 = scmp.ne.s32.totalorder %s180, %s182
    %p189 = scmp.eq.s32.totalorder %s25, 1
    %p190 = por %p188, %p189
    %p191 = scmp.ne.s32.totalorder %s182, %s183
    %p192 = scmp.eq.s32.totalorder %s25, 0
    %p193 = por %p191, %p192
    %p194 = scmp.ne.s32.totalorder %s182, %s183
    %p195 = scmp.eq.s32.totalorder %s26, 1
    %p196 = por %p194, %p195
    %p198 = scmp.ne.s32.totalorder %s183, %s197
    %p199 = scmp.eq.s32.totalorder %s26, 0
    %p200 = por %p198, %p199
    %s202 = sadd.s32 %s201, 1
    %p205 = scmp.eq.s32.totalorder %s20, 1
    %p206 = scmp.ne.s32.totalorder %s201, %s203
    %p207 = scmp.eq.s32.totalorder %s20, 0
    %p208 = por %p206, %p207
    %p209 = scmp.ne.s32.totalorder %s201, %s203
    %p210 = scmp.eq.s32.totalorder %s25, 1
    %p211 = por %p209, %p210
    %p212 = scmp.ne.s32.totalorder %s203, %s204
    %p213 = scmp.eq.s32.totalorder %s25, 0
    %p214 = por %p212, %p213
    %p215 = scmp.ne.s32.totalorder %s203, %s204
    %p216 = scmp.eq.s32.totalorder %s26, 1
    %p217 = por %p215, %p216
    %p219 = scmp.ne.s32.totalorder %s204, %s218
    %p220 = scmp.eq.s32.totalorder %s26, 0
    %p221 = por %p219, %p220
    %s223 = sadd.s32 %s222, 1
    %p226 = scmp.eq.s32.totalorder %s20, 1
    %p227 = scmp.ne.s32.totalorder %s222, %s224
    %p228 = scmp.eq.s32.totalorder %s20, 0
    %p229 = por %p227, %p228
    %p230 = scmp.ne.s32.totalorder %s222, %s224
    %p231 = scmp.eq.s32.totalorder %s25, 1
    %p232 = por %p230, %p231
    %p233 = scmp.ne.s32.totalorder %s224, %s225
    %p234 = scmp.eq.s32.totalorder %s25, 0
    %p235 = por %p233, %p234
    %p236 = scmp.ne.s32.totalorder %s224, %s225
    %p237 = scmp.eq.s32.totalorder %s26, 1
    %p238 = por %p236, %p237
    %p240 = scmp.ne.s32.totalorder %s225, %s239
    %p241 = scmp.eq.s32.totalorder %s26, 0
    %p242 = por %p240, %p241
    %s244 = sadd.s32 %s243, 1
    %p247 = scmp.eq.s32.totalorder %s20, 1
    %p248 = scmp.ne.s32.totalorder %s243, %s245
    %p249 = scmp.eq.s32.totalorder %s20, 0
    %p250 = por %p248, %p249
    %p251 = scmp.ne.s32.totalorder %s243, %s245
    %p252 = scmp.eq.s32.totalorder %s25, 1
    %p253 = por %p251, %p252
    %p254 = scmp.ne.s32.totalorder %s245, %s246
    %p255 = scmp.eq.s32.totalorder %s25, 0
    %p256 = por %p254, %p255
    %p257 = scmp.ne.s32.totalorder %s245, %s246
    %p258 = scmp.eq.s32.totalorder %s26, 1
    %p259 = por %p257, %p258
    %p261 = scmp.ne.s32.totalorder %s246, %s260
    %p262 = scmp.eq.s32.totalorder %s26, 0
    %p263 = por %p261, %p262
    %s265 = sadd.s32 %s264, 1
    %p268 = scmp.eq.s32.totalorder %s20, 1
    %p269 = scmp.ne.s32.totalorder %s264, %s266
    %p270 = scmp.eq.s32.totalorder %s20, 0
    %p271 = por %p269, %p270
    %p272 = scmp.ne.s32.totalorder %s264, %s266
    %p273 = scmp.eq.s32.totalorder %s25, 1
    %p274 = por %p272, %p273
    %p275 = scmp.ne.s32.totalorder %s266, %s267
    %p276 = scmp.eq.s32.totalorder %s25, 0
    %p277 = por %p275, %p276
    %p278 = scmp.ne.s32.totalorder %s266, %s267
    %p279 = scmp.eq.s32.totalorder %s26, 1
    %p280 = por %p278, %p279
    %p282 = scmp.ne.s32.totalorder %s267, %s281
    %p283 = scmp.eq.s32.totalorder %s26, 0
    %p284 = por %p282, %p283
    %s285 = ssub.s32 %s20, %s27
    %p286 = scmp.eq.s32.totalorder %s285, 0
    %s288 = sadd.s32 %s287, 1
    %s289 = scalar_select %p286, %s287, %s288
    %p292 = pneg %p286
    %p293 = scmp.eq.s32.totalorder %s20, 1
    %p294 = por %p292, %p293
    %p295 = scmp.ne.s32.totalorder %s287, %s290
    %p296 = scmp.eq.s32.totalorder %s20, 0
    %p297 = por %p295, %p296
    %p298 = scmp.ne.s32.totalorder %s287, %s290
    %p299 = scmp.eq.s32.totalorder %s25, 1
    %p300 = por %p298, %p299
    %p301 = scmp.ne.s32.totalorder %s290, %s291
    %p302 = scmp.eq.s32.totalorder %s25, 0
    %p303 = por %p301, %p302
    %p304 = scmp.ne.s32.totalorder %s290, %s291
    %p305 = scmp.eq.s32.totalorder %s26, 1
    %p306 = por %p304, %p305
    %p308 = scmp.ne.s32.totalorder %s291, %s307
    %p309 = scmp.eq.s32.totalorder %s26, 0
    %p310 = por %p308, %p309
    %s311 = ssub.s32 %s20, %s27
    %p312 = scmp.eq.s32.totalorder %s311, 0
    %s314 = sadd.s32 %s313, 1
    %s315 = scalar_select %p312, %s313, %s314
    %p318 = pneg %p312
    %p319 = scmp.eq.s32.totalorder %s20, 1
    %p320 = por %p318, %p319
    %p321 = scmp.ne.s32.totalorder %s313, %s316
    %p322 = scmp.eq.s32.totalorder %s20, 0
    %p323 = por %p321, %p322
    %p324 = scmp.ne.s32.totalorder %s313, %s316
    %p325 = scmp.eq.s32.totalorder %s25, 1
    %p326 = por %p324, %p325
    %p327 = scmp.ne.s32.totalorder %s316, %s317
    %p328 = scmp.eq.s32.totalorder %s25, 0
    %p329 = por %p327, %p328
    %p330 = scmp.ne.s32.totalorder %s316, %s317
    %p331 = scmp.eq.s32.totalorder %s26, 1
    %p332 = por %p330, %p331
    %p334 = scmp.ne.s32.totalorder %s317, %s333
    %p335 = scmp.eq.s32.totalorder %s26, 0
    %p336 = por %p334, %p335
    %p337 = scmp.le.s32.totalorder 1, %s20
    %p338 = scmp.lt.s32.totalorder %s20, 3
    %p339 = pnand %p337, %p338
    %p340 = pneg %p339
    // Predicated region
    $region9: #{downsampling_bottleneck.1} parent=5 // pred_check
      _
    $region10: #{downsampling_bottleneck.1} parent=5 // pred_check_branch
      %342 = sbr.rel (%p339) target = $region12
    $region11: #{downsampling_bottleneck.1} parent=5 // pred_region
      %s343 = ssub.s32 %s20, 1
      // Predicated region
      $region13: #{downsampling_bottleneck.1} parent=11 // pred_check
        %p344 = pneg %p67
      $region14: #{downsampling_bottleneck.1} parent=11 // pred_check_branch
        %346 = sbr.rel (%p344) target = $region16
      $region15: #{downsampling_bottleneck.1} parent=11 // pred_region
        _
      $region16: #{downsampling_bottleneck.1} parent=11 // pred_fallthru
        _
      // Predicated region
      $region17: #{downsampling_bottleneck.1} parent=11 // pred_check
        %p347 = pneg %p88
      $region18: #{downsampling_bottleneck.1} parent=11 // pred_check_branch
        %349 = sbr.rel (%p347) target = $region20
      $region19: #{downsampling_bottleneck.1} parent=11 // pred_region
        _
      $region20: #{downsampling_bottleneck.1} parent=11 // pred_fallthru
        _
      // Predicated region
      $region21: #{downsampling_bottleneck.1} parent=11 // pred_check
        %p350 = pneg %p109
      $region22: #{downsampling_bottleneck.1} parent=11 // pred_check_branch
        %352 = sbr.rel (%p350) target = $region24
      $region23: #{downsampling_bottleneck.1} parent=11 // pred_region
        _
      $region24: #{downsampling_bottleneck.1} parent=11 // pred_fallthru
        _
      // Predicated region
      $region25: #{downsampling_bottleneck.1} parent=11 // pred_check
        %p353 = pneg %p130
      $region26: #{downsampling_bottleneck.1} parent=11 // pred_check_branch
        %355 = sbr.rel (%p353) target = $region28
      $region27: #{downsampling_bottleneck.1} parent=11 // pred_region
        _
      $region28: #{downsampling_bottleneck.1} parent=11 // pred_fallthru
        _
      // Predicated region
      $region29: #{downsampling_bottleneck.1} parent=11 // pred_check
        %p356 = pneg %p151
      $region30: #{downsampling_bottleneck.1} parent=11 // pred_check_branch
        %358 = sbr.rel (%p356) target = $region32
      $region31: #{downsampling_bottleneck.1} parent=11 // pred_region
        _
      $region32: #{downsampling_bottleneck.1} parent=11 // pred_fallthru
        _
      // Predicated region
      $region33: #{downsampling_bottleneck.1} parent=11 // pred_check
        %p359 = pneg %p172
      $region34: #{downsampling_bottleneck.1} parent=11 // pred_check_branch
        %361 = sbr.rel (%p359) target = $region36
      $region35: #{downsampling_bottleneck.1} parent=11 // pred_region
        _
      $region36: #{downsampling_bottleneck.1} parent=11 // pred_fallthru
        _
      // Predicated region
      $region37: #{downsampling_bottleneck.1} parent=11 // pred_check
        %p362 = pneg %p193
      $region38: #{downsampling_bottleneck.1} parent=11 // pred_check_branch
        %364 = sbr.rel (%p362) target = $region40
      $region39: #{downsampling_bottleneck.1} parent=11 // pred_region
        _
      $region40: #{downsampling_bottleneck.1} parent=11 // pred_fallthru
        _
      // Predicated region
      $region41: #{downsampling_bottleneck.1} parent=11 // pred_check
        %p365 = pneg %p214
      $region42: #{downsampling_bottleneck.1} parent=11 // pred_check_branch
        %367 = sbr.rel (%p365) target = $region44
      $region43: #{downsampling_bottleneck.1} parent=11 // pred_region
        _
      $region44: #{downsampling_bottleneck.1} parent=11 // pred_fallthru
        _
      // Predicated region
      $region45: #{downsampling_bottleneck.1} parent=11 // pred_check
        %p368 = pneg %p235
      $region46: #{downsampling_bottleneck.1} parent=11 // pred_check_branch
        %370 = sbr.rel (%p368) target = $region48
      $region47: #{downsampling_bottleneck.1} parent=11 // pred_region
        _
      $region48: #{downsampling_bottleneck.1} parent=11 // pred_fallthru
        _
      // Predicated region
      $region49: #{downsampling_bottleneck.1} parent=11 // pred_check
        %p371 = pneg %p256
      $region50: #{downsampling_bottleneck.1} parent=11 // pred_check_branch
        %373 = sbr.rel (%p371) target = $region52
      $region51: #{downsampling_bottleneck.1} parent=11 // pred_region
        _
      $region52: #{downsampling_bottleneck.1} parent=11 // pred_fallthru
        _
      // Predicated region
      $region53: #{downsampling_bottleneck.1} parent=11 // pred_check
        %p374 = pneg %p277
      $region54: #{downsampling_bottleneck.1} parent=11 // pred_check_branch
        %376 = sbr.rel (%p374) target = $region56
      $region55: #{downsampling_bottleneck.1} parent=11 // pred_region
        _
      $region56: #{downsampling_bottleneck.1} parent=11 // pred_fallthru
        _
    $region12: #{downsampling_bottleneck.1} parent=5 // pred_fallthru
      _
    %p377 = scmp.lt.s32.totalorder %s20, 2
    // Predicated region
    $region57: #{downsampling_bottleneck.1} parent=5 // pred_check
      %p378 = pneg %p377
    $region58: #{downsampling_bottleneck.1} parent=5 // pred_check_branch
      %380 = sbr.rel (%p378) target = $region60
    $region59: #{downsampling_bottleneck.1} parent=5 // pred_region
      // Predicated region
      $region61: #{downsampling_bottleneck.1} parent=59 // pred_check
        %p381 = pneg %p40
      $region62: #{downsampling_bottleneck.1} parent=59 // pred_check_branch
        %383 = sbr.rel (%p381) target = $region64
      $region63: #{downsampling_bottleneck.1} parent=59 // pred_region
        %p384 = scmp.lt.s32.totalorder %s20, 1
        %s385 = scalar_select %p384, %s20, 1
        %s386 = smul.addr %s385, 16
        %s387 = smul.addr %s386, 8
        %s388 = scalar_lea.vmem %s0, %s387
      $region64: #{downsampling_bottleneck.1} parent=59 // pred_fallthru
        _
    $region60: #{downsampling_bottleneck.1} parent=5 // pred_fallthru
      _
    %p389 = scmp.le.s32.totalorder 1, %s20
    %p390 = scmp.lt.s32.totalorder %s20, 3
    %p391 = pnand %p389, %p390
    %p392 = pneg %p391
    // Predicated region
    $region65: #{downsampling_bottleneck.1} parent=5 // pred_check
      _
    $region66: #{downsampling_bottleneck.1} parent=5 // pred_check_branch
      %394 = sbr.rel (%p391) target = $region68
    $region67: #{downsampling_bottleneck.1} parent=5 // pred_region
      %s395 = ssub.s32 %s20, 1
      %p396 = scmp.lt.s32.totalorder %s25, 1
      %s397 = scalar_select %p396, %s25, 1
      %s398 = smul.addr %s397, 16
      %s399 = smul.addr %s398, 8
      %s400 = scalar_lea.vmem %s0, %s399
      %p401 = pneg %p46
      %p402 = pneg %p43
      %p403 = pneg %p67
      %p404 = pneg %p64
      %p405 = pneg %p88
      %p406 = pneg %p85
      %p407 = pneg %p109
      %p408 = pneg %p106
      %p409 = pneg %p130
      %p410 = pneg %p127
      %p411 = pneg %p151
      %p412 = pneg %p148
      %p413 = pneg %p172
      %p414 = pneg %p169
      %p415 = pneg %p193
      %p416 = pneg %p190
      %p417 = pneg %p214
      %p418 = pneg %p211
      %p419 = pneg %p235
      %p420 = pneg %p232
      %p421 = pneg %p256
      %p422 = pneg %p253
      %p423 = pneg %p277
      %p424 = pneg %p274
      %p425 = pneg %p303
      %p426 = pneg %p300
      %p427 = scmp.lt.s32.totalorder %s25, 1
      %s428 = scalar_select %p427, %s25, 1
      %s429 = smul.addr %s428, 16
      %s430 = smul.addr %s429, 8
      %s431 = scalar_lea.vmem %s12, %s430
      %p432 = pneg %p329
      %p433 = pneg %p326
      %p434 = scmp.lt.s32.totalorder %s25, 1
      %s435 = scalar_select %p434, %s25, 1
      %s436 = smul.addr %s435, 4
      %s437 = smul.addr %s436, 8
      %s438 = scalar_lea.vmem %s13, %s437
      %p439 = scmp.lt.s32.totalorder %s25, 1
      %s440 = scalar_select %p439, %s25, 1
      %s441 = smul.addr %s440, 16
      %s442 = smul.addr %s441, 8
      %s443 = scalar_lea.vmem %s0, %s442
      %p444 = scmp.lt.s32.totalorder %s25, 1
      %s445 = scalar_select %p444, %s25, 1
      %s446 = smul.addr %s445, 16
      %s447 = smul.addr %s446, 8
      %s448 = scalar_lea.vmem %s12, %s447
      %p449 = scmp.lt.s32.totalorder %s25, 1
      %s450 = scalar_select %p449, %s25, 1
      %s451 = smul.addr %s450, 4
      %s452 = smul.addr %s451, 8
      %s453 = scalar_lea.vmem %s13, %s452
      %v455 = vld [vmem:[%s443] sm:$0xff]
      %v456 = vld [vmem:[%s443 + $0x8] sm:$0xff]
      %v457 = vld [vmem:[%s443 + $0x10] sm:$0xff]
      %v458 = vld [vmem:[%s443 + $0x18] sm:$0xff]
      %v459 = vld [vmem:[%s443 + $0x20] sm:$0xff]
      %v460 = vld [vmem:[%s443 + $0x28] sm:$0xff]
      %v461 = vld [vmem:[%s443 + $0x30] sm:$0xff]
      %v462 = vld [vmem:[%s443 + $0x38] sm:$0xff]
      %v463 = vld [vmem:[%s443 + $0x40] sm:$0xff]
      %v464 = vld [vmem:[%s443 + $0x48] sm:$0xff]
      %v465 = vld [vmem:[%s443 + $0x50] sm:$0xff]
      %v466 = vld [vmem:[%s443 + $0x58] sm:$0xff]
      %v467 = vld [vmem:[%s443 + $0x60] sm:$0xff]
      %v468 = vld [vmem:[%s443 + $0x68] sm:$0xff]
      %v469 = vld [vmem:[%s443 + $0x70] sm:$0xff]
      %v470 = vld [vmem:[%s443 + $0x78] sm:$0xff]
      %v471 = vld [vmem:[%s1] sm:$0x3]
      %v472 = vlaneseq
      %v473 = vshrl.u32 %v472, 7
      %v474 = vsub.s32 0, %v473
      %v475 = vrot.slane %v471, %v474
      %v476 = vlaneseq
      %v477 = vshrl.u32 %v476, 7
      %v478 = vsub.s32 1, %v477
      %v479 = vrot.slane %v471, %v478
      %vm480 = vcmp.gt.f32.partialorder %v459, %v455
      %vm481 = vcmp.gt.f32.partialorder %v460, %v456
      %vm482 = vcmp.gt.f32.partialorder %v461, %v457
      %vm483 = vcmp.gt.f32.partialorder %v462, %v458
      %v484 = vadd.s32 %v471, 1
      %v485 = vlaneseq
      %v486 = vshrl.u32 %v485, 7
      %v487 = vsub.s32 0, %v486
      %v488 = vrot.slane %v484, %v487
      %v489 = vlaneseq
      %v490 = vshrl.u32 %v489, 7
      %v491 = vsub.s32 1, %v490
      %v492 = vrot.slane %v484, %v491
      %v493 = vsel %vm480, %v488, %v475
      %v494 = vsel %vm481, %v492, %v479
      %v495 = vsel %vm482, %v488, %v475
      %v496 = vsel %vm483, %v492, %v479
      %v497 = vsel %vm480, %v459, %v455
      %v498 = vsel %vm481, %v460, %v456
      %v499 = vsel %vm482, %v461, %v457
      %v500 = vsel %vm483, %v462, %v458
      %vm501 = vcmp.gt.f32.partialorder %v463, %v497
      %vm502 = vcmp.gt.f32.partialorder %v464, %v498
      %vm503 = vcmp.gt.f32.partialorder %v465, %v499
      %vm504 = vcmp.gt.f32.partialorder %v466, %v500
      %v505 = vadd.s32 %v471, 32
      %v506 = vlaneseq
      %v507 = vshrl.u32 %v506, 7
      %v508 = vsub.s32 0, %v507
      %v509 = vrot.slane %v505, %v508
      %v510 = vlaneseq
      %v511 = vshrl.u32 %v510, 7
      %v512 = vsub.s32 1, %v511
      %v513 = vrot.slane %v505, %v512
      %v514 = vsel %vm501, %v509, %v493
      %v515 = vsel %vm502, %v513, %v494
      %v516 = vsel %vm503, %v509, %v495
      %v517 = vsel %vm504, %v513, %v496
      %v518 = vsel %vm501, %v463, %v497
      %v519 = vsel %vm502, %v464, %v498
      %v520 = vsel %vm503, %v465, %v499
      %v521 = vsel %vm504, %v466, %v500
      %vm522 = vcmp.gt.f32.partialorder %v467, %v518
      %vm523 = vcmp.gt.f32.partialorder %v468, %v519
      %vm524 = vcmp.gt.f32.partialorder %v469, %v520
      %vm525 = vcmp.gt.f32.partialorder %v470, %v521
      %v526 = vadd.s32 %v471, 33
      %v527 = vlaneseq
      %v528 = vshrl.u32 %v527, 7
      %v529 = vsub.s32 0, %v528
      %v530 = vrot.slane %v526, %v529
      %v531 = vlaneseq
      %v532 = vshrl.u32 %v531, 7
      %v533 = vsub.s32 1, %v532
      %v534 = vrot.slane %v526, %v533
      %v535 = vsel %vm522, %v530, %v514
      %v536 = vsel %vm523, %v534, %v515
      %v537 = vsel %vm524, %v530, %v516
      %v538 = vsel %vm525, %v534, %v517
      %v539 = vsel %vm522, %v467, %v518
      %v540 = vsel %vm523, %v468, %v519
      %v541 = vsel %vm524, %v469, %v520
      %v542 = vsel %vm525, %v470, %v521
      %543 = vst [vmem:[%s453] sm:$0xff] %v535
      %544 = vst [vmem:[%s453 + $0x8] sm:$0xff] %v536
      %545 = vst [vmem:[%s453 + $0x10] sm:$0xff] %v537
      %546 = vst [vmem:[%s453 + $0x18] sm:$0xff] %v538
      %v547 = vld [vmem:[%s3] sm:$0x3]
      %v548 = vpack.c.bf16 %v457, %v455
      %v549 = vpack.c.bf16 %v458, %v456
      %v550 = vpack.c.bf16 %v461, %v459
      %v551 = vpack.c.bf16 %v462, %v460
      %v552 = vpack.c.bf16 %v465, %v463
      %v553 = vpack.c.bf16 %v466, %v464
      %v554 = vpack.c.bf16 %v469, %v467
      %v555 = vpack.c.bf16 %v470, %v468
      %vm556 = vcmask 523264
      %v558 = vsel %vm556, %v547, 0
      %560 = vmatprep.subr.bf16.mxu0 0
      %561 = vmatpush1.bf16.msra.mxu0 0
      %562 = vmatprep.subr.bf16.mxu0 0
      %563 = vmatpush1.bf16.msra.mxu0 0
      %564 = vmatprep.subr.bf16.mxu0 0
      %565 = vmatpush1.bf16.msra.mxu0 0
      %566 = vmatprep.subr.bf16.mxu0 0
      %567 = vmatpush1.bf16.msra.mxu0 0
      %568 = vmatprep.subr.bf16.mxu0 %v555
      %569 = vmatpush1.bf16.msra.mxu0 %v554
      %570 = vmatprep.subr.bf16.mxu0 %v553
      %571 = vmatpush1.bf16.msra.mxu0 %v552
      %572 = vmatprep.subr.bf16.mxu0 %v551
      %573 = vmatpush1.bf16.msra.mxu0 %v550
      %574 = vmatprep.subr.bf16.mxu0 %v549
      %575 = vmatpush1.bf16.msra.mxu0 %v548
      %576 = vmatprep.subr.bf16.mxu0 0
      %577 = vmatpush2.bf16.msra.mxu0 0
      %578 = vmatprep.subr.bf16.mxu0 0
      %579 = vmatpush2.bf16.msra.mxu0 0
      %580 = vmatprep.subr.bf16.mxu0 0
      %581 = vmatpush2.bf16.msra.mxu0 0
      %582 = vmatprep.subr.bf16.mxu0 0
      %583 = vmatpush2.bf16.msra.mxu0 0
      %584 = vmatprep.subr.bf16.mxu0 0
      %585 = vmatpush2.bf16.msra.mxu0 0
      %586 = vmatprep.subr.bf16.mxu0 0
      %587 = vmatpush2.bf16.msra.mxu0 0
      %588 = vmatprep.subr.bf16.mxu0 0
      %589 = vmatpush2.bf16.msra.mxu0 0
      %590 = vmatprep.subr.bf16.mxu0 0
      %591 = vmatpush2.bf16.msra.mxu0 0
      %592 = vmatprep.mubr.bf16.mxu0 0
      %593 = vmatmul.mubr.bf16.gmra.mxu0 %v558
      %v594 = vpop.f32.mrf.mxu0
      %v595 = vadd.f32 0.0, %v594
      %v596 = vpop.f32.mrf.mxu0
      %v597 = vadd.f32 0.0, %v596
      %v598 = vpop.f32.mrf.mxu0
      %v599 = vpop.f32.mrf.mxu0
      %600 = vdwg.mxu0
      %v601 = vld [vmem:[%s4] sm:$0xf]
      %603 = vset.pattern.permute.xlu0 0
      %604 = vperm.xlu0 %603, %v601
      %v605 = vpop.permute.xlu0 %604
      %v607 = vmul.f32 %v595, %v605
      %v608 = vmul.f32 %v597, %v605
      %v609 = vld [vmem:[%s5] sm:$0xf]
      %611 = vset.pattern.permute.xlu0 0
      %612 = vperm.xlu0 %611, %v609
      %v613 = vpop.permute.xlu0 %612
      %v615 = vadd.f32 %v607, %v613
      %v616 = vadd.f32 %v608, %v613
      %v617 = vmax.f32 %v615, 0.0
      %v618 = vmax.f32 %v616, 0.0
      %vm619 = vcmask 134144
      %620 = vst.msk [vmem:[#allocation2] sm:$0xf] %vm619, 0.0
      %vm621 = vcmask 273544
      %622 = vst.msk [vmem:[#allocation2 + $0x8] sm:$0xf] %vm621, 0.0
      %v625 = vcombine.low %v617, %v618
      %626 = vrot.lane.b32.xlu0 %v625, 17
      %v627 = vpop.permute.xlu0 %626
      %v628 = vrot.slane %v627, 4
      %vm629 = vcmask 138240
      %v630 = vsel %vm629, %v628, %v627
      %vm633 = vcmask 1043592
      %vm634 = vcmask 1047556
      %vm635 = vmor %vm634, %vm633
      %636 = vst.msk [vmem:[#allocation2] sm:$0xff] %vm635, %v630
      %637 = vst.msk [vmem:[#allocation2 + $0x8] sm:$0xf] %vm619, %v628
      %v638 = vld [vmem:[%s2] ss:$2 sm:$0x3]
      %s639 = scalar_lea.vmem %s2, 1
      %v640 = vld [vmem:[%s639] ss:$2 sm:$0x3]
      %v641 = vld [vmem:[#allocation2] sm:$0xff]
      %v643 = vlaneseq
      %v644 = vshrl.u32 %v643, 7
      %v645 = vsub.s32 0, %v644
      %v646 = vrot.slane %v638, %v645
      %v647 = vlaneseq
      %v648 = vshrl.u32 %v647, 7
      %v649 = vsub.s32 1, %v648
      %v650 = vrot.slane %v638, %v649
      %v651 = vcombine.low %v646, %v650
      %v653 = vmul.f32 %v641, %v651
      %v654 = vld [vmem:[#allocation2 + $0x8] sm:$0xf]
      %v656 = vlaneseq
      %v657 = vshrl.u32 %v656, 7
      %v658 = vsub.s32 0, %v657
      %v659 = vrot.slane %v640, %v658
      %v660 = vlaneseq
      %v661 = vshrl.u32 %v660, 7
      %v662 = vsub.s32 1, %v661
      %v663 = vrot.slane %v640, %v662
      %v664 = vcombine.low %v659, %v663
      %665 = vrot.lane.b32.xlu0 %v664, 2
      %v666 = vpop.permute.xlu0 %665
      %v667 = vrot.slane %v666, 4
      %vm668 = vcmask 15360
      %v669 = vsel %vm668, %v667, %v666
      %v672 = vmul.f32 %v641, %v669
      %v673 = vmul.f32 %v654, %v667
      %674 = vrot.lane.b32.xlu0 %v651, 16
      %v675 = vpop.permute.xlu0 %674
      %v676 = vrot.slane %v675, 4
      %vm677 = vcmask 130048
      %v678 = vsel %vm677, %v676, %v675
      %v681 = vmul.f32 %v641, %v678
      %v682 = vmul.f32 %v654, %v676
      %683 = vrot.lane.b32.xlu0 %v664, 18
      %v684 = vpop.permute.xlu0 %683
      %v685 = vrot.slane %v684, 4
      %vm686 = vcmask 146432
      %v687 = vsel %vm686, %v685, %v684
      %v690 = vmul.f32 %v641, %v687
      %v691 = vmul.f32 %v654, %v685
      %692 = vrot.lane.b32.xlu0 %v651, 32
      %v693 = vpop.permute.xlu0 %692
      %v694 = vrot.slane %v693, 4
      %vm695 = vcmask 261120
      %v696 = vsel %vm695, %v694, %v693
      %v699 = vmul.f32 %v641, %v696
      %v700 = vmul.f32 %v654, %v694
      %701 = vrot.lane.b32.xlu0 %v664, 34
      %v702 = vpop.permute.xlu0 %701
      %v703 = vrot.slane %v702, 4
      %vm704 = vcmask 277504
      %v705 = vsel %vm704, %v703, %v702
      %v708 = vmul.f32 %v641, %v705
      %v709 = vmul.f32 %v654, %v703
      %v711 = vcombine.high %v653, %v653
      %v715 = vcombine.low %v641, %v641
      %v716 = vcombine.low %v654, %v654
      %717 = vrot.lane.b32.xlu0 %v715, 127
      %v718 = vpop.permute.xlu0 %717
      %719 = vrot.lane.b32.xlu0 %v641, 127
      %v720 = vpop.permute.xlu0 %719
      %721 = vrot.lane.b32.xlu0 %v716, 127
      %v722 = vpop.permute.xlu0 %721
      %vm723 = vcmask 1039360
      %v724 = vsel %vm723, %v718, %v720
      %v725 = vsel %vm723, %v720, %v722
      %v730 = vcombine.high %v672, %v672
      %731 = vrot.lane.b32.xlu0 %v672, 126
      %v732 = vpop.permute.xlu0 %731
      %733 = vrot.lane.b32.xlu0 %v730, 126
      %v734 = vpop.permute.xlu0 %733
      %735 = vrot.lane.b32.xlu0 %v673, 126
      %v736 = vpop.permute.xlu0 %735
      %vm737 = vcmask 1031168
      %v738 = vsel %vm737, %v732, %v734
      %v739 = vsel %vm737, %v734, %v736
      %v744 = vcombine.low %v681, %v681
      %v745 = vcombine.low %v682, %v682
      %746 = vrot.lane.b32.xlu0 %v744, 112
      %v747 = vpop.permute.xlu0 %746
      %748 = vrot.lane.b32.xlu0 %v681, 112
      %v749 = vpop.permute.xlu0 %748
      %750 = vrot.lane.b32.xlu0 %v745, 112
      %v751 = vpop.permute.xlu0 %750
      %vm752 = vcmask 916480
      %v753 = vsel %vm752, %v747, %v749
      %v754 = vsel %vm752, %v749, %v751
      %v757 = vcombine.high %v641, %v641
      %758 = vrot.lane.b32.xlu0 %v641, 111
      %v759 = vpop.permute.xlu0 %758
      %760 = vrot.lane.b32.xlu0 %v757, 111
      %v761 = vpop.permute.xlu0 %760
      %762 = vrot.lane.b32.xlu0 %v654, 111
      %v763 = vpop.permute.xlu0 %762
      %vm764 = vcmask 908288
      %v765 = vsel %vm764, %v759, %v761
      %v766 = vsel %vm764, %v761, %v763
      %v771 = vcombine.low %v690, %v690
      %v772 = vcombine.low %v691, %v691
      %773 = vrot.lane.b32.xlu0 %v771, 110
      %v774 = vpop.permute.xlu0 %773
      %775 = vrot.lane.b32.xlu0 %v690, 110
      %v776 = vpop.permute.xlu0 %775
      %777 = vrot.lane.b32.xlu0 %v772, 110
      %v778 = vpop.permute.xlu0 %777
      %vm779 = vcmask 900096
      %v780 = vsel %vm779, %v774, %v776
      %v781 = vsel %vm779, %v776, %v778
      %v786 = vcombine.high %v699, %v699
      %787 = vrot.lane.b32.xlu0 %v699, 96
      %v788 = vpop.permute.xlu0 %787
      %789 = vrot.lane.b32.xlu0 %v786, 96
      %v790 = vpop.permute.xlu0 %789
      %791 = vrot.lane.b32.xlu0 %v700, 96
      %v792 = vpop.permute.xlu0 %791
      %vm793 = vcmask 785408
      %v794 = vsel %vm793, %v788, %v790
      %v795 = vsel %vm793, %v790, %v792
      %798 = vrot.lane.b32.xlu0 %v715, 95
      %v799 = vpop.permute.xlu0 %798
      %800 = vrot.lane.b32.xlu0 %v641, 95
      %v801 = vpop.permute.xlu0 %800
      %802 = vrot.lane.b32.xlu0 %v716, 95
      %v803 = vpop.permute.xlu0 %802
      %vm804 = vcmask 777216
      %v805 = vsel %vm804, %v799, %v801
      %v806 = vsel %vm804, %v801, %v803
      %v811 = vcombine.high %v708, %v708
      %812 = vrot.lane.b32.xlu0 %v708, 94
      %v813 = vpop.permute.xlu0 %812
      %814 = vrot.lane.b32.xlu0 %v811, 94
      %v815 = vpop.permute.xlu0 %814
      %816 = vrot.lane.b32.xlu0 %v709, 94
      %v817 = vpop.permute.xlu0 %816
      %vm818 = vcmask 769024
      %v819 = vsel %vm818, %v813, %v815
      %v820 = vsel %vm818, %v815, %v817
      %vm823 = vcmask 1043456
      %v824 = vsel %vm823, %v653, %v724
      %v825 = vsel %vm823, %v711, %v725
      %v826 = vsel %vm823, %v738, %v753
      %v827 = vsel %vm823, %v739, %v754
      %v828 = vsel %vm823, %v765, %v780
      %v829 = vsel %vm823, %v766, %v781
      %v830 = vsel %vm823, %v794, %v805
      %v831 = vsel %vm823, %v795, %v806
      %v832 = vpack.c.bf16 %v826, %v824
      %v833 = vpack.c.bf16 %v827, %v825
      %v834 = vpack.c.bf16 %v830, %v828
      %v835 = vpack.c.bf16 %v831, %v829
      %v836 = vpack.c.bf16 %v819, %v819
      %v837 = vpack.c.bf16 %v820, %v820
      %v838 = vld [vmem:[%s6] sm:$0x3]
      %vm839 = vcmask 293888
      %v841 = vsel %vm839, %v838, 0
      %vm843 = vcmask 1041408
      %v845 = vsel %vm843, %v836, 0
      %v848 = vsel %vm843, %v837, 0
      %850 = vmatprep.subr.bf16.mxu0 0
      %851 = vmatpush1.bf16.msra.mxu0 0
      %852 = vmatprep.subr.bf16.mxu0 0
      %853 = vmatpush1.bf16.msra.mxu0 0
      %854 = vmatprep.subr.bf16.mxu0 0
      %855 = vmatpush1.bf16.msra.mxu0 0
      %856 = vmatprep.subr.bf16.mxu0 0
      %857 = vmatpush1.bf16.msra.mxu0 0
      %858 = vmatprep.subr.bf16.mxu0 0
      %859 = vmatpush1.bf16.msra.mxu0 0
      %860 = vmatprep.subr.bf16.mxu0 %v848
      %861 = vmatpush1.bf16.msra.mxu0 %v845
      %862 = vmatprep.subr.bf16.mxu0 %v835
      %863 = vmatpush1.bf16.msra.mxu0 %v834
      %864 = vmatprep.subr.bf16.mxu0 %v833
      %865 = vmatpush1.bf16.msra.mxu0 %v832
      %866 = vmatprep.subr.bf16.mxu0 0
      %867 = vmatpush2.bf16.msra.mxu0 0
      %868 = vmatprep.subr.bf16.mxu0 0
      %869 = vmatpush2.bf16.msra.mxu0 0
      %870 = vmatprep.subr.bf16.mxu0 0
      %871 = vmatpush2.bf16.msra.mxu0 0
      %872 = vmatprep.subr.bf16.mxu0 0
      %873 = vmatpush2.bf16.msra.mxu0 0
      %874 = vmatprep.subr.bf16.mxu0 0
      %875 = vmatpush2.bf16.msra.mxu0 0
      %876 = vmatprep.subr.bf16.mxu0 0
      %877 = vmatpush2.bf16.msra.mxu0 0
      %878 = vmatprep.subr.bf16.mxu0 0
      %879 = vmatpush2.bf16.msra.mxu0 0
      %880 = vmatprep.subr.bf16.mxu0 0
      %881 = vmatpush2.bf16.msra.mxu0 0
      %882 = vmatprep.mubr.bf16.mxu0 0
      %883 = vmatmul.mubr.bf16.gmra.mxu0 %v841
      %v884 = vpop.f32.mrf.mxu0
      %v885 = vadd.f32 0.0, %v884
      %v886 = vpop.f32.mrf.mxu0
      %v887 = vadd.f32 0.0, %v886
      %v888 = vpop.f32.mrf.mxu0
      %v889 = vpop.f32.mrf.mxu0
      %890 = vdwg.mxu0
      %v891 = vld [vmem:[%s7] sm:$0xf]
      %893 = vset.pattern.permute.xlu0 0
      %894 = vperm.xlu0 %893, %v891
      %v895 = vpop.permute.xlu0 %894
      %v897 = vmul.f32 %v885, %v895
      %v898 = vmul.f32 %v887, %v895
      %v899 = vld [vmem:[%s8] sm:$0xf]
      %901 = vset.pattern.permute.xlu0 0
      %902 = vperm.xlu0 %901, %v899
      %v903 = vpop.permute.xlu0 %902
      %v905 = vadd.f32 %v897, %v903
      %v906 = vadd.f32 %v898, %v903
      %v907 = vmax.f32 %v905, 0.0
      %v908 = vmax.f32 %v906, 0.0
      %v909 = vld [vmem:[%s9] sm:$0xf]
      %v910 = vld [vmem:[%s9 + $0x4] sm:$0xf]
      %v911 = vld [vmem:[%s9 + $0x8] sm:$0xf]
      %v912 = vld [vmem:[%s9 + $0xc] sm:$0xf]
      %v913 = vld [vmem:[%s9 + $0x10] sm:$0xf]
      %v914 = vld [vmem:[%s9 + $0x14] sm:$0xf]
      %v915 = vld [vmem:[%s9 + $0x18] sm:$0xf]
      %v916 = vld [vmem:[%s9 + $0x1c] sm:$0xf]
      %v917 = vpack.c.bf16 %v907, %v907
      %v918 = vpack.c.bf16 %v908, %v908
      %v927 = vunpack.c.l.b16 %v909
      %v928 = vunpack.c.l.b16 %v910
      %v929 = vunpack.c.l.b16 %v911
      %v930 = vunpack.c.l.b16 %v912
      %v931 = vunpack.c.l.b16 %v913
      %v932 = vunpack.c.l.b16 %v914
      %v933 = vunpack.c.l.b16 %v915
      %v934 = vunpack.c.l.b16 %v916
      %v935 = vpack.c.b16 %v928, %v927
      %v936 = vpack.c.b16 %v930, %v929
      %v937 = vpack.c.b16 %v932, %v931
      %v938 = vpack.c.b16 %v934, %v933
      %vm939 = vcmask 31744
      %v941 = vsel %vm939, %v935, 0
      %v944 = vsel %vm939, %v936, 0
      %v947 = vsel %vm939, %v937, 0
      %v950 = vsel %vm939, %v938, 0
      %v953 = vsel %vm843, %v917, 0
      %v956 = vsel %vm843, %v918, 0
      %958 = vmatprep.subr.bf16.mxu0 0
      %959 = vmatpush1.bf16.msra.mxu0 0
      %960 = vmatprep.subr.bf16.mxu0 0
      %961 = vmatpush1.bf16.msra.mxu0 0
      %962 = vmatprep.subr.bf16.mxu0 0
      %963 = vmatpush1.bf16.msra.mxu0 0
      %964 = vmatprep.subr.bf16.mxu0 0
      %965 = vmatpush1.bf16.msra.mxu0 0
      %966 = vmatprep.subr.bf16.mxu0 0
      %967 = vmatpush1.bf16.msra.mxu0 0
      %968 = vmatprep.subr.bf16.mxu0 0
      %969 = vmatpush1.bf16.msra.mxu0 0
      %970 = vmatprep.subr.bf16.mxu0 0
      %971 = vmatpush1.bf16.msra.mxu0 0
      %972 = vmatprep.subr.bf16.mxu0 %v956
      %973 = vmatpush1.bf16.msra.mxu0 %v953
      %974 = vmatprep.subr.bf16.mxu0 0
      %975 = vmatpush2.bf16.msra.mxu0 0
      %976 = vmatprep.subr.bf16.mxu0 0
      %977 = vmatpush2.bf16.msra.mxu0 0
      %978 = vmatprep.subr.bf16.mxu0 0
      %979 = vmatpush2.bf16.msra.mxu0 0
      %980 = vmatprep.subr.bf16.mxu0 0
      %981 = vmatpush2.bf16.msra.mxu0 0
      %982 = vmatprep.subr.bf16.mxu0 0
      %983 = vmatpush2.bf16.msra.mxu0 0
      %984 = vmatprep.subr.bf16.mxu0 0
      %985 = vmatpush2.bf16.msra.mxu0 0
      %986 = vmatprep.subr.bf16.mxu0 0
      %987 = vmatpush2.bf16.msra.mxu0 0
      %988 = vmatprep.subr.bf16.mxu0 0
      %989 = vmatpush2.bf16.msra.mxu0 0
      %990 = vmatprep.mubr.bf16.mxu0 0
      %991 = vmatmul.mubr.bf16.gmra.mxu0 %v941
      %v992 = vpop.f32.mrf.mxu0
      %v993 = vadd.f32 0.0, %v992
      %v994 = vpop.f32.mrf.mxu0
      %v995 = vadd.f32 0.0, %v994
      %v996 = vpop.f32.mrf.mxu0
      %v997 = vadd.f32 0.0, %v996
      %v998 = vpop.f32.mrf.mxu0
      %v999 = vadd.f32 0.0, %v998
      %1000 = vmatprep.mubr.bf16.mxu0 0
      %1001 = vmatmul.mubr.bf16.gmra.mxu0 %v944
      %v1002 = vpop.f32.mrf.mxu0
      %v1003 = vadd.f32 0.0, %v1002
      %v1004 = vpop.f32.mrf.mxu0
      %v1005 = vadd.f32 0.0, %v1004
      %v1006 = vpop.f32.mrf.mxu0
      %v1007 = vadd.f32 0.0, %v1006
      %v1008 = vpop.f32.mrf.mxu0
      %v1009 = vadd.f32 0.0, %v1008
      %1010 = vmatprep.mubr.bf16.mxu0 0
      %1011 = vmatmul.mubr.bf16.gmra.mxu0 %v947
      %v1012 = vpop.f32.mrf.mxu0
      %v1013 = vadd.f32 0.0, %v1012
      %v1014 = vpop.f32.mrf.mxu0
      %v1015 = vadd.f32 0.0, %v1014
      %v1016 = vpop.f32.mrf.mxu0
      %v1017 = vadd.f32 0.0, %v1016
      %v1018 = vpop.f32.mrf.mxu0
      %v1019 = vadd.f32 0.0, %v1018
      %1020 = vmatprep.mubr.bf16.mxu0 0
      %1021 = vmatmul.mubr.bf16.gmra.mxu0 %v950
      %v1022 = vpop.f32.mrf.mxu0
      %v1023 = vadd.f32 0.0, %v1022
      %v1024 = vpop.f32.mrf.mxu0
      %v1025 = vadd.f32 0.0, %v1024
      %v1026 = vpop.f32.mrf.mxu0
      %v1027 = vadd.f32 0.0, %v1026
      %v1028 = vpop.f32.mrf.mxu0
      %v1029 = vadd.f32 0.0, %v1028
      %1030 = vdwg.mxu0
      %v1031 = vld [vmem:[%s10] sm:$0xff]
      %v1032 = vld [vmem:[%s10 + $0x8] sm:$0xff]
      %v1033 = vld [vmem:[%s10 + $0x10] sm:$0xff]
      %v1034 = vld [vmem:[%s10 + $0x18] sm:$0xff]
      %v1035 = vld [vmem:[%s10 + $0x20] sm:$0xff]
      %v1036 = vld [vmem:[%s10 + $0x28] sm:$0xff]
      %v1037 = vld [vmem:[%s10 + $0x30] sm:$0xff]
      %v1038 = vld [vmem:[%s10 + $0x38] sm:$0xff]
      %1040 = vset.pattern.permute.xlu0 0
      %1041 = vperm.xlu0 %1040, %v1031
      %v1042 = vpop.permute.xlu0 %1041
      %1045 = vset.pattern.permute.xlu0 0
      %1046 = vperm.xlu0 %1045, %v1032
      %v1047 = vpop.permute.xlu0 %1046
      %1050 = vset.pattern.permute.xlu0 0
      %1051 = vperm.xlu0 %1050, %v1033
      %v1052 = vpop.permute.xlu0 %1051
      %1055 = vset.pattern.permute.xlu0 0
      %1056 = vperm.xlu0 %1055, %v1034
      %v1057 = vpop.permute.xlu0 %1056
      %1060 = vset.pattern.permute.xlu0 0
      %1061 = vperm.xlu0 %1060, %v1035
      %v1062 = vpop.permute.xlu0 %1061
      %1065 = vset.pattern.permute.xlu0 0
      %1066 = vperm.xlu0 %1065, %v1036
      %v1067 = vpop.permute.xlu0 %1066
      %1070 = vset.pattern.permute.xlu0 0
      %1071 = vperm.xlu0 %1070, %v1037
      %v1072 = vpop.permute.xlu0 %1071
      %1075 = vset.pattern.permute.xlu0 0
      %1076 = vperm.xlu0 %1075, %v1038
      %v1077 = vpop.permute.xlu0 %1076
      %v1079 = vmul.f32 %v993, %v1042
      %v1080 = vmul.f32 %v995, %v1042
      %v1081 = vmul.f32 %v997, %v1047
      %v1082 = vmul.f32 %v999, %v1047
      %v1083 = vmul.f32 %v1003, %v1052
      %v1084 = vmul.f32 %v1005, %v1052
      %v1085 = vmul.f32 %v1007, %v1057
      %v1086 = vmul.f32 %v1009, %v1057
      %v1087 = vmul.f32 %v1013, %v1062
      %v1088 = vmul.f32 %v1015, %v1062
      %v1089 = vmul.f32 %v1017, %v1067
      %v1090 = vmul.f32 %v1019, %v1067
      %v1091 = vmul.f32 %v1023, %v1072
      %v1092 = vmul.f32 %v1025, %v1072
      %v1093 = vmul.f32 %v1027, %v1077
      %v1094 = vmul.f32 %v1029, %v1077
      %v1095 = vld [vmem:[%s11] sm:$0xff]
      %v1096 = vld [vmem:[%s11 + $0x8] sm:$0xff]
      %v1097 = vld [vmem:[%s11 + $0x10] sm:$0xff]
      %v1098 = vld [vmem:[%s11 + $0x18] sm:$0xff]
      %v1099 = vld [vmem:[%s11 + $0x20] sm:$0xff]
      %v1100 = vld [vmem:[%s11 + $0x28] sm:$0xff]
      %v1101 = vld [vmem:[%s11 + $0x30] sm:$0xff]
      %v1102 = vld [vmem:[%s11 + $0x38] sm:$0xff]
      %1104 = vset.pattern.permute.xlu0 0
      %1105 = vperm.xlu0 %1104, %v1095
      %v1106 = vpop.permute.xlu0 %1105
      %1109 = vset.pattern.permute.xlu0 0
      %1110 = vperm.xlu0 %1109, %v1096
      %v1111 = vpop.permute.xlu0 %1110
      %1114 = vset.pattern.permute.xlu0 0
      %1115 = vperm.xlu0 %1114, %v1097
      %v1116 = vpop.permute.xlu0 %1115
      %1119 = vset.pattern.permute.xlu0 0
      %1120 = vperm.xlu0 %1119, %v1098
      %v1121 = vpop.permute.xlu0 %1120
      %1124 = vset.pattern.permute.xlu0 0
      %1125 = vperm.xlu0 %1124, %v1099
      %v1126 = vpop.permute.xlu0 %1125
      %1129 = vset.pattern.permute.xlu0 0
      %1130 = vperm.xlu0 %1129, %v1100
      %v1131 = vpop.permute.xlu0 %1130
      %1134 = vset.pattern.permute.xlu0 0
      %1135 = vperm.xlu0 %1134, %v1101
      %v1136 = vpop.permute.xlu0 %1135
      %1139 = vset.pattern.permute.xlu0 0
      %1140 = vperm.xlu0 %1139, %v1102
      %v1141 = vpop.permute.xlu0 %1140
      %v1143 = vadd.f32 %v1079, %v1106
      %v1144 = vadd.f32 %v1080, %v1106
      %v1145 = vadd.f32 %v1081, %v1111
      %v1146 = vadd.f32 %v1082, %v1111
      %v1147 = vadd.f32 %v1083, %v1116
      %v1148 = vadd.f32 %v1084, %v1116
      %v1149 = vadd.f32 %v1085, %v1121
      %v1150 = vadd.f32 %v1086, %v1121
      %v1151 = vadd.f32 %v1087, %v1126
      %v1152 = vadd.f32 %v1088, %v1126
      %v1153 = vadd.f32 %v1089, %v1131
      %v1154 = vadd.f32 %v1090, %v1131
      %v1155 = vadd.f32 %v1091, %v1136
      %v1156 = vadd.f32 %v1092, %v1136
      %v1157 = vadd.f32 %v1093, %v1141
      %v1158 = vadd.f32 %v1094, %v1141
      %v1159 = vmax.f32 %v1143, 0.0
      %v1160 = vmax.f32 %v1144, 0.0
      %v1161 = vmax.f32 %v1145, 0.0
      %v1162 = vmax.f32 %v1146, 0.0
      %v1163 = vmax.f32 %v1147, 0.0
      %v1164 = vmax.f32 %v1148, 0.0
      %v1165 = vmax.f32 %v1149, 0.0
      %v1166 = vmax.f32 %v1150, 0.0
      %v1167 = vmax.f32 %v1151, 0.0
      %v1168 = vmax.f32 %v1152, 0.0
      %v1169 = vmax.f32 %v1153, 0.0
      %v1170 = vmax.f32 %v1154, 0.0
      %v1171 = vmax.f32 %v1155, 0.0
      %v1172 = vmax.f32 %v1156, 0.0
      %v1173 = vmax.f32 %v1157, 0.0
      %v1174 = vmax.f32 %v1158, 0.0
      %v1175 = vadd.f32 %v1159, %v539
      %v1176 = vadd.f32 %v1160, %v540
      %v1177 = vadd.f32 %v1161, %v541
      %v1178 = vadd.f32 %v1162, %v542
      %v1179 = vmax.f32 %v1175, 0.0
      %v1180 = vmax.f32 %v1176, 0.0
      %v1181 = vmax.f32 %v1177, 0.0
      %v1182 = vmax.f32 %v1178, 0.0
      %1183 = vst [vmem:[%s448] sm:$0xff] %v1179
      %1184 = vst [vmem:[%s448 + $0x8] sm:$0xff] %v1180
      %1185 = vst [vmem:[%s448 + $0x10] sm:$0xff] %v1181
      %1186 = vst [vmem:[%s448 + $0x18] sm:$0xff] %v1182
      %v1187 = vmax.f32 %v1163, 0.0
      %v1188 = vmax.f32 %v1164, 0.0
      %v1189 = vmax.f32 %v1165, 0.0
      %v1190 = vmax.f32 %v1166, 0.0
      %v1191 = vmax.f32 %v1167, 0.0
      %v1192 = vmax.f32 %v1168, 0.0
      %v1193 = vmax.f32 %v1169, 0.0
      %v1194 = vmax.f32 %v1170, 0.0
      %v1195 = vmax.f32 %v1171, 0.0
      %v1196 = vmax.f32 %v1172, 0.0
      %v1197 = vmax.f32 %v1173, 0.0
      %v1198 = vmax.f32 %v1174, 0.0
      %1199 = vst [vmem:[%s448 + $0x20] sm:$0xff] %v1187
      %1200 = vst [vmem:[%s448 + $0x28] sm:$0xff] %v1188
      %1201 = vst [vmem:[%s448 + $0x30] sm:$0xff] %v1189
      %1202 = vst [vmem:[%s448 + $0x38] sm:$0xff] %v1190
      %1203 = vst [vmem:[%s448 + $0x40] sm:$0xff] %v1191
      %1204 = vst [vmem:[%s448 + $0x48] sm:$0xff] %v1192
      %1205 = vst [vmem:[%s448 + $0x50] sm:$0xff] %v1193
      %1206 = vst [vmem:[%s448 + $0x58] sm:$0xff] %v1194
      %1207 = vst [vmem:[%s448 + $0x60] sm:$0xff] %v1195
      %1208 = vst [vmem:[%s448 + $0x68] sm:$0xff] %v1196
      %1209 = vst [vmem:[%s448 + $0x70] sm:$0xff] %v1197
      %1210 = vst [vmem:[%s448 + $0x78] sm:$0xff] %v1198
      %p1211 = scmp.lt.s32.totalorder %s25, 1
      %s1212 = scalar_select %p1211, %s25, 1
      %s1213 = smul.addr %s1212, 16
      %s1214 = smul.addr %s1213, 8
      %s1215 = scalar_lea.vmem %s12, %s1214
      %p1216 = scmp.lt.s32.totalorder %s25, 1
      %s1217 = scalar_select %p1216, %s25, 1
      %s1218 = smul.addr %s1217, 4
      %s1219 = smul.addr %s1218, 8
      %s1220 = scalar_lea.vmem %s13, %s1219
      // Predicated region
      $region69: #{downsampling_bottleneck.1} parent=67 // pred_check
        %p1221 = pneg %p300
      $region70: #{downsampling_bottleneck.1} parent=67 // pred_check_branch
        %1223 = sbr.rel (%p1221) target = $region72
      $region71: #{downsampling_bottleneck.1} parent=67 // pred_region
        _
      $region72: #{downsampling_bottleneck.1} parent=67 // pred_fallthru
        _
      // Predicated region
      $region73: #{downsampling_bottleneck.1} parent=67 // pred_check
        %p1224 = pneg %p326
      $region74: #{downsampling_bottleneck.1} parent=67 // pred_check_branch
        %1226 = sbr.rel (%p1224) target = $region76
      $region75: #{downsampling_bottleneck.1} parent=67 // pred_region
        _
      $region76: #{downsampling_bottleneck.1} parent=67 // pred_fallthru
        _
    $region68: #{downsampling_bottleneck.1} parent=5 // pred_fallthru
      _
    %p1227 = scmp.le.s32.totalorder 2, %s20
    // Predicated region
    $region77: #{downsampling_bottleneck.1} parent=5 // pred_check
      %p1228 = pneg %p1227
    $region78: #{downsampling_bottleneck.1} parent=5 // pred_check_branch
      %1230 = sbr.rel (%p1228) target = $region80
    $region79: #{downsampling_bottleneck.1} parent=5 // pred_region
      %s1231 = ssub.s32 %s20, 2
      // Predicated region
      $region81: #{downsampling_bottleneck.1} parent=79 // pred_check
        %p1232 = pneg %p306
      $region82: #{downsampling_bottleneck.1} parent=79 // pred_check_branch
        %1234 = sbr.rel (%p1232) target = $region84
      $region83: #{downsampling_bottleneck.1} parent=79 // pred_region
        %p1235 = scmp.lt.s32.totalorder %s26, 1
        %s1236 = scalar_select %p1235, %s26, 1
        %s1237 = smul.addr %s1236, 16
        %s1238 = smul.addr %s1237, 8
        %s1239 = scalar_lea.vmem %s12, %s1238
      $region84: #{downsampling_bottleneck.1} parent=79 // pred_fallthru
        _
      // Predicated region
      $region85: #{downsampling_bottleneck.1} parent=79 // pred_check
        %p1240 = pneg %p332
      $region86: #{downsampling_bottleneck.1} parent=79 // pred_check_branch
        %1242 = sbr.rel (%p1240) target = $region88
      $region87: #{downsampling_bottleneck.1} parent=79 // pred_region
        %p1243 = scmp.lt.s32.totalorder %s26, 1
        %s1244 = scalar_select %p1243, %s26, 1
        %s1245 = smul.addr %s1244, 4
        %s1246 = smul.addr %s1245, 8
        %s1247 = scalar_lea.vmem %s13, %s1246
      $region88: #{downsampling_bottleneck.1} parent=79 // pred_fallthru
        _
    $region80: #{downsampling_bottleneck.1} parent=5 // pred_fallthru
      _
  $region6: #{downsampling_bottleneck.1} parent=0 // loop_footer
    %s24 = sadd.s32 1, %s20
  $region7: #{downsampling_bottleneck.1} parent=0 // loop_footer_branch
    %19 = sbr.rel target = $region3
  $region8: #{downsampling_bottleneck.1} parent=0 // loop_exit
    _

</llo_original>
